<compile_context>
chip_gen: v7x
topology: tpu7x:2x2x1
jax: 0.10.0
libtpu: 0.0.40
codegen_flags: <defaults>
</compile_context>

<pallas_src>
import functools

import jax
import jax.numpy as jnp
from jax.experimental import pallas as pl
from jax.experimental.pallas import tpu as pltpu

_BN_EPS = 1e-5


# ---------------------------------------------------------------------------
# Fused Pallas kernel
# ---------------------------------------------------------------------------

def _detection_head_kernel(x_ref, w1_ref, b1_ref, w2_ref, b2_ref,
                           wp_ref, bp_ref, mask_ref, o_ref, h1_ref, *, H, W):
    # x_ref   : (BB, Cin, P)   bf16  pre-padded input, flat padded pixel grid in lanes
    # w1_ref  : (9*Ch, Cin)    bf16  conv1 weights (BN scale folded), per-tap (Ch, Cin) blocks
    # b1_ref  : (Ch, 1)        f32   folded BN bias (broadcast along lanes)
    # w2_ref  : (9*Ch, Ch)     bf16  conv2 weights
    # b2_ref  : (Ch, 1)        f32
    # wp_ref  : (Cp, Ch)       bf16  1x1 pred conv
    # bp_ref  : (Cp, 1)        f32
    # mask_ref: (1, Lq)        f32   1.0 on interior columns of the q0 grid, 0.0 on pad cols
    # o_ref   : (BB, Cp, Lq)   f32   lane-dense output block (wrapper drops pad columns)
    # h1_ref  : (Ch, P)        bf16  VMEM scratch: padded conv1 activation
    # P = (H+2)*(W+2)+2 (2 slack lanes so the largest tap shift stays in bounds)
    # Lq = H*(W+2): the q0 grid = output pixels interleaved with 2 garbage pad cols per row.
    BB = x_ref.shape[0]
    Ch = wp_ref.shape[1]
    Wp2 = W + 2
    Lq = H * Wp2
    P = h1_ref.shape[1]
    head = Wp2 + 1                      # top pad row + left pad of the first interior row

    mask = mask_ref[...]                # (1, Lq)

    def conv3x3(load_slab, w_ref, cout):
        # 9 accumulating MXU dots over lane-contiguous shifted slices (no im2col concat,
        # no reshapes).  Each tap (ky, kx) is a pure flat shift s = ky*(W+2)+kx.
        acc = None
        for t in range(9):
            ky, kx = divmod(t, 3)
            s = ky * Wp2 + kx
            part = jnp.dot(w_ref[t * cout:(t + 1) * cout, :], load_slab(s),
                           preferred_element_type=jnp.float32)
            acc = part if acc is None else acc + part
        return acc                      # (cout, Lq) f32

    # Border-only halo init for the conv1->conv2 scratch, done EVERY grid step
    # (not program_id-gated) so it is safe under megacore 'parallel' scheduling.
    h1_ref[:, 0:head] = jnp.zeros((Ch, head), h1_ref.dtype)
    h1_ref[:, head + Lq:P] = jnp.zeros((Ch, P - head - Lq), h1_ref.dtype)

    for i in range(BB):                 # static unrolled loop over images in the block
        # conv1 (3x3, BN scale folded) + bias + SiLU; taps read straight from the
        # pre-padded input block.
        y1 = conv3x3(lambda s, ii=i: x_ref[ii, :, s:s + Lq], w1_ref, Ch) + b1_ref[...]
        y1 = y1 * jax.nn.sigmoid(y1)
        # Re-zero the two per-row pad columns (mask multiply) and store the whole
        # padded activation row-range as one contiguous lane-dense slab.
        h1_ref[:, head:head + Lq] = (y1 * mask).astype(h1_ref.dtype)

        # conv2 (3x3) + bias + SiLU.
        y2 = conv3x3(lambda s: h1_ref[:, s:s + Lq], w2_ref, Ch) + b2_ref[...]
        y2 = y2 * jax.nn.sigmoid(y2)

        # pred: 1x1 conv + bias.  Pad columns carry garbage; the wrapper slices
        # them off, so no masking is needed here.
        y3 = jnp.dot(wp_ref[...], y2.astype(wp_ref.dtype),
                     preferred_element_type=jnp.float32) + bp_ref[...]
        o_ref[i, :, :] = y3.astype(o_ref.dtype)


# ---------------------------------------------------------------------------
# Wrapper (NCHW in / NCHW out, matches the PyTorch module)
# ---------------------------------------------------------------------------

def detection_head_forward(x_nchw, prep, *, batch_block=1):
    """Fused DetectionHead forward.

    batch_block: images per grid step.  Use 1 on v7x (>=2 parallel grid steps
    across the two TensorCores); use B on single-TC chips (v5e/v6e) to collapse
    the serial grid and amortise per-step pipeline overhead.
    """
    B, Cin, H, W = x_nchw.shape
    Cp, Ch = prep["wp"].shape
    assert B % batch_block == 0, (B, batch_block)
    Wp2 = W + 2
    P = (H + 2) * Wp2 + 2
    Lq = H * Wp2

    # 1-px halo pad + bf16 cast in one wrapper pass (NCHW is already the
    # channel-plane layout the kernel wants, so no transpose is needed), then
    # flatten the padded pixel grid into the lane axis and add 2 slack lanes.
    xp = jnp.pad(x_nchw, ((0, 0), (0, 0), (1, 1), (1, 1)))
    xp = jnp.pad(xp.reshape(B, Cin, (H + 2) * Wp2),
                 ((0, 0), (0, 0), (0, 2))).astype(jnp.bfloat16)      # (B, Cin, P)

    # 1.0 on interior columns of the q0 grid, 0.0 on the two pad columns per row.
    mask = (jnp.arange(Lq, dtype=jnp.int32) % Wp2 < W).astype(jnp.float32)[None, :]

    out_flat = pl.pallas_call(
        functools.partial(_detection_head_kernel, H=H, W=W),
        out_shape=jax.ShapeDtypeStruct((B, Cp, Lq), jnp.float32),
        grid=(B // batch_block,),
        in_specs=[
            pl.BlockSpec((batch_block, Cin, P), lambda b: (b, 0, 0)),
            pl.BlockSpec((9 * Ch, Cin), lambda b: (0, 0)),
            pl.BlockSpec((Ch, 1), lambda b: (0, 0)),
            pl.BlockSpec((9 * Ch, Ch), lambda b: (0, 0)),
            pl.BlockSpec((Ch, 1), lambda b: (0, 0)),
            pl.BlockSpec((Cp, Ch), lambda b: (0, 0)),
            pl.BlockSpec((Cp, 1), lambda b: (0, 0)),
            pl.BlockSpec((1, Lq), lambda b: (0, 0)),
        ],
        out_specs=pl.BlockSpec((batch_block, Cp, Lq), lambda b: (b, 0, 0)),
        scratch_shapes=[pltpu.VMEM((Ch, P), jnp.bfloat16)],
        compiler_params=pltpu.CompilerParams(dimension_semantics=("parallel",)),
    )(xp, prep["w1"], prep["b1"], prep["w2"], prep["b2"],
      prep["wp"], prep["bp"], mask)

    # (B, Cp, H*(W+2)) -> drop the 2 per-row pad columns -> NCHW output.
    return out_flat.reshape(B, Cp, H, Wp2)[:, :, :, :W]


# ---------------------------------------------------------------------------
# One-time parameter preparation (outside the forward hot path)
# ---------------------------------------------------------------------------

def prepare_params(p):
    """Fold eval-mode BN into the conv weights, lay weights out as per-tap
    (Cout, Cin) blocks, and pre-cast MXU operands to bf16.  Run once."""
    def fold_conv_bn(w_oihw, gamma, beta, mean, var):
        scale = gamma / jnp.sqrt(var + _BN_EPS)                  # (Cout,)
        bias = beta - mean * scale                               # (Cout,)
        w = w_oihw * scale[:, None, None, None]                  # fold scale into w
        cout, cin = w.shape[0], w.shape[1]
        # OIHW -> (ky, kx, cout, cin) -> (9*cout, cin): per-tap (cout, cin) blocks.
        w = jnp.transpose(w, (2, 3, 0, 1)).reshape(9 * cout, cin)
        return w.astype(jnp.bfloat16), bias[:, None].astype(jnp.float32)

    w1, b1 = fold_conv_bn(p["w1"], p["bn1_gamma"], p["bn1_beta"],
                          p["bn1_mean"], p["bn1_var"])
    w2, b2 = fold_conv_bn(p["w2"], p["bn2_gamma"], p["bn2_beta"],
                          p["bn2_mean"], p["bn2_var"])
    wp = p["wp"][:, :, 0, 0].astype(jnp.bfloat16)                # (Cp, Ch)
    bp = p["bp"][:, None].astype(jnp.float32)                    # (Cp, 1)
    return {"w1": w1, "b1": b1, "w2": w2, "b2": b2, "wp": wp, "bp": bp}


# ---------------------------------------------------------------------------
# Deterministic parameter init (shapes follow the PyTorch module __init__)
# ---------------------------------------------------------------------------

def init_params(key, in_channels, num_classes):
    c_half = in_channels // 2
    c_pred = num_classes + 5
    ks = jax.random.split(key, 12)
    return {
        "w1": 0.1 * jax.random.normal(ks[0], (c_half, in_channels, 3, 3), jnp.float32),
        "bn1_gamma": 1.0 + 0.1 * jax.random.normal(ks[1], (c_half,), jnp.float32),
        "bn1_beta": 0.1 * jax.random.normal(ks[2], (c_half,), jnp.float32),
        "bn1_mean": 0.05 * jax.random.normal(ks[3], (c_half,), jnp.float32),
        "bn1_var": jnp.abs(1.0 + 0.1 * jax.random.normal(ks[4], (c_half,), jnp.float32)),
        "w2": 0.1 * jax.random.normal(ks[5], (c_half, c_half, 3, 3), jnp.float32),
        "bn2_gamma": 1.0 + 0.1 * jax.random.normal(ks[6], (c_half,), jnp.float32),
        "bn2_beta": 0.1 * jax.random.normal(ks[7], (c_half,), jnp.float32),
        "bn2_mean": 0.05 * jax.random.normal(ks[8], (c_half,), jnp.float32),
        "bn2_var": jnp.abs(1.0 + 0.1 * jax.random.normal(ks[9], (c_half,), jnp.float32)),
        "wp": 0.1 * jax.random.normal(ks[10], (c_pred, c_half, 1, 1), jnp.float32),
        "bp": 0.05 * jax.random.normal(ks[11], (c_pred,), jnp.float32),
    }


# ---------------------------------------------------------------------------
# Pure-JAX reference (eval-mode BN), used for correctness check
# ---------------------------------------------------------------------------

def _ref_forward(x_nchw, p):
    def conv_bn_silu(x, w, gamma, beta, mean, var):
        y = jax.lax.conv_general_dilated(
            x, w, window_strides=(1, 1), padding=((1, 1), (1, 1)),
            dimension_numbers=("NCHW", "OIHW", "NCHW"))
        scale = gamma / jnp.sqrt(var + _BN_EPS)
        y = y * scale[None, :, None, None] + (beta - mean * scale)[None, :, None, None]
        return y * jax.nn.sigmoid(y)

    x = conv_bn_silu(x_nchw, p["w1"], p["bn1_gamma"], p["bn1_beta"],
                     p["bn1_mean"], p["bn1_var"])
    x = conv_bn_silu(x, p["w2"], p["bn2_gamma"], p["bn2_beta"],
                     p["bn2_mean"], p["bn2_var"])
    y = jax.lax.conv_general_dilated(
        x, p["wp"], window_strides=(1, 1), padding=((0, 0), (0, 0)),
        dimension_numbers=("NCHW", "OIHW", "NCHW"))
    return y + p["bp"][None, :, None, None]


# ---------------------------------------------------------------------------

if __name__ == "__main__":
    B, in_channels, H, W = 2, 16, 16, 16
    num_classes = 3                                   # -> c_pred = 8

    key = jax.random.PRNGKey(0)
    k_x, k_p = jax.random.split(key)
    x = jax.random.normal(k_x, (B, in_channels, H, W), jnp.float32)   # NCHW input
    params = init_params(k_p, in_channels, num_classes)

    prep = prepare_params(params)                     # one-time param prep
    ref = jax.block_until_ready(_ref_forward(x, params))

    # batch_block=1: >=2 parallel grid steps (v7x megacore friendly).
    fwd1 = jax.jit(functools.partial(detection_head_forward, batch_block=1))
    out1 = jax.block_until_ready(fwd1(x, prep))
    # batch_block=B: collapsed grid, one fat step (v5e/v6e friendly).
    fwdB = jax.jit(functools.partial(detection_head_forward, batch_block=B))
    outB = jax.block_until_ready(fwdB(x, prep))

    assert out1.shape == (B, num_classes + 5, H, W), out1.shape
    # Tolerance reflects the bf16 weight/activation path (f32 accumulation).
    assert jnp.allclose(out1, ref, atol=1e-1, rtol=1e-1), \
        float(jnp.max(jnp.abs(out1 - ref)))
    assert jnp.allclose(outB, ref, atol=1e-1, rtol=1e-1), \
        float(jnp.max(jnp.abs(outB - ref)))

    print("KERNEL_OK")
</pallas_src>

<mosaic_0001>
module attributes {stable_mosaic.version = 11 : i64} {
  func.func @_detection_head_kernel(%arg0: i32, %arg1: memref<1x16x326xbf16, #tpu.memory_space<vmem>>, %arg2: memref<72x16xbf16, #tpu.memory_space<vmem>>, %arg3: memref<8x1xf32, #tpu.memory_space<vmem>>, %arg4: memref<72x8xbf16, #tpu.memory_space<vmem>>, %arg5: memref<8x1xf32, #tpu.memory_space<vmem>>, %arg6: memref<8x8xbf16, #tpu.memory_space<vmem>>, %arg7: memref<8x1xf32, #tpu.memory_space<vmem>>, %arg8: memref<1x288xf32, #tpu.memory_space<vmem>>, %arg9: memref<1x8x288xf32, #tpu.memory_space<vmem>>, %arg10: memref<8x326xbf16, #tpu.memory_space<vmem>>) attributes {dimension_semantics = [#tpu.dimension_semantics<parallel>], iteration_bounds = array<i64: 2>, scalar_prefetch = 0 : i64, scratch_operands = 1 : i64, tpu.core_type = #tpu.core_type<tc>, window_params = [{transform_indices = @transform_0, window_bounds = array<i64: 1, 16, 326>}, {pipeline_mode = #tpu.pipeline_mode<synchronous>, transform_indices = @transform_1, window_bounds = array<i64: 72, 16>}, {pipeline_mode = #tpu.pipeline_mode<synchronous>, transform_indices = @transform_2, window_bounds = array<i64: 8, 1>}, {pipeline_mode = #tpu.pipeline_mode<synchronous>, transform_indices = @transform_3, window_bounds = array<i64: 72, 8>}, {pipeline_mode = #tpu.pipeline_mode<synchronous>, transform_indices = @transform_4, window_bounds = array<i64: 8, 1>}, {pipeline_mode = #tpu.pipeline_mode<synchronous>, transform_indices = @transform_5, window_bounds = array<i64: 8, 8>}, {pipeline_mode = #tpu.pipeline_mode<synchronous>, transform_indices = @transform_6, window_bounds = array<i64: 8, 1>}, {pipeline_mode = #tpu.pipeline_mode<synchronous>, transform_indices = @transform_7, window_bounds = array<i64: 1, 288>}, {transform_indices = @transform_8, window_bounds = array<i64: 1, 8, 288>}]} {
    %c0 = arith.constant 0 : index
    %c0_0 = arith.constant 0 : index
    %0 = vector.load %arg8[%c0, %c0_0] : memref<1x288xf32, #tpu.memory_space<vmem>>, vector<1x288xf32>
    %cst = arith.constant 0.000000e+00 : bf16
    %1 = vector.broadcast %cst : bf16 to vector<8x19xbf16>
    %c0_1 = arith.constant 0 : index
    %c0_2 = arith.constant 0 : index
    %2 = vector.load %arg10[%c0_1, %c0_2] : memref<8x326xbf16, #tpu.memory_space<vmem>>, vector<8x19xbf16>
    tpu.vector_store %arg10[%c0_1, %c0_2], %1 {strides = array<i32>} : memref<8x326xbf16, #tpu.memory_space<vmem>>, vector<8x19xbf16>,
    %cst_3 = arith.constant 0.000000e+00 : bf16
    %3 = vector.broadcast %cst_3 : bf16 to vector<8x19xbf16>
    %c0_4 = arith.constant 0 : index
    %c307 = arith.constant 307 : index
    %4 = vector.load %arg10[%c0_4, %c307] : memref<8x326xbf16, #tpu.memory_space<vmem>>, vector<8x19xbf16>
    tpu.vector_store %arg10[%c0_4, %c307], %3 {strides = array<i32>} : memref<8x326xbf16, #tpu.memory_space<vmem>>, vector<8x19xbf16>,
    %c0_5 = arith.constant 0 : index
    %c0_6 = arith.constant 0 : index
    %5 = vector.load %arg2[%c0_5, %c0_6] : memref<72x16xbf16, #tpu.memory_space<vmem>>, vector<8x16xbf16>
    %c0_7 = arith.constant 0 : index
    %c0_8 = arith.constant 0 : index
    %c0_9 = arith.constant 0 : index
    %6 = vector.load %arg1[%c0_7, %c0_8, %c0_9] : memref<1x16x326xbf16, #tpu.memory_space<vmem>>, vector<1x16x288xbf16>
    %7 = vector.shape_cast %6 : vector<1x16x288xbf16> to vector<16x288xbf16>
    %cst_10 = arith.constant dense<0.000000e+00> : vector<8x288xf32>
    %8 = tpu.matmul %5, %7, %cst_10 {dimension_numbers = #tpu.dot_dimension_numbers<[1], [0], [0], [1], [0, 0, 1, 1], [], []>} : vector<8x16xbf16>, vector<16x288xbf16>, vector<8x288xf32> -> vector<8x288xf32>
    %c8 = arith.constant 8 : index
    %c0_11 = arith.constant 0 : index
    %9 = vector.load %arg2[%c8, %c0_11] : memref<72x16xbf16, #tpu.memory_space<vmem>>, vector<8x16xbf16>
    %c0_12 = arith.constant 0 : index
    %c0_13 = arith.constant 0 : index
    %c1 = arith.constant 1 : index
    %10 = vector.load %arg1[%c0_12, %c0_13, %c1] : memref<1x16x326xbf16, #tpu.memory_space<vmem>>, vector<1x16x288xbf16>
    %11 = vector.shape_cast %10 : vector<1x16x288xbf16> to vector<16x288xbf16>
    %cst_14 = arith.constant dense<0.000000e+00> : vector<8x288xf32>
    %12 = tpu.matmul %9, %11, %cst_14 {dimension_numbers = #tpu.dot_dimension_numbers<[1], [0], [0], [1], [0, 0, 1, 1], [], []>} : vector<8x16xbf16>, vector<16x288xbf16>, vector<8x288xf32> -> vector<8x288xf32>
    %13 = arith.addf %8, %12 : vector<8x288xf32>
    %c16 = arith.constant 16 : index
    %c0_15 = arith.constant 0 : index
    %14 = vector.load %arg2[%c16, %c0_15] : memref<72x16xbf16, #tpu.memory_space<vmem>>, vector<8x16xbf16>
    %c0_16 = arith.constant 0 : index
    %c0_17 = arith.constant 0 : index
    %c2 = arith.constant 2 : index
    %15 = vector.load %arg1[%c0_16, %c0_17, %c2] : memref<1x16x326xbf16, #tpu.memory_space<vmem>>, vector<1x16x288xbf16>
    %16 = vector.shape_cast %15 : vector<1x16x288xbf16> to vector<16x288xbf16>
    %cst_18 = arith.constant dense<0.000000e+00> : vector<8x288xf32>
    %17 = tpu.matmul %14, %16, %cst_18 {dimension_numbers = #tpu.dot_dimension_numbers<[1], [0], [0], [1], [0, 0, 1, 1], [], []>} : vector<8x16xbf16>, vector<16x288xbf16>, vector<8x288xf32> -> vector<8x288xf32>
    %18 = arith.addf %13, %17 : vector<8x288xf32>
    %c24 = arith.constant 24 : index
    %c0_19 = arith.constant 0 : index
    %19 = vector.load %arg2[%c24, %c0_19] : memref<72x16xbf16, #tpu.memory_space<vmem>>, vector<8x16xbf16>
    %c0_20 = arith.constant 0 : index
    %c0_21 = arith.constant 0 : index
    %c18 = arith.constant 18 : index
    %20 = vector.load %arg1[%c0_20, %c0_21, %c18] : memref<1x16x326xbf16, #tpu.memory_space<vmem>>, vector<1x16x288xbf16>
    %21 = vector.shape_cast %20 : vector<1x16x288xbf16> to vector<16x288xbf16>
    %cst_22 = arith.constant dense<0.000000e+00> : vector<8x288xf32>
    %22 = tpu.matmul %19, %21, %cst_22 {dimension_numbers = #tpu.dot_dimension_numbers<[1], [0], [0], [1], [0, 0, 1, 1], [], []>} : vector<8x16xbf16>, vector<16x288xbf16>, vector<8x288xf32> -> vector<8x288xf32>
    %23 = arith.addf %18, %22 : vector<8x288xf32>
    %c32 = arith.constant 32 : index
    %c0_23 = arith.constant 0 : index
    %24 = vector.load %arg2[%c32, %c0_23] : memref<72x16xbf16, #tpu.memory_space<vmem>>, vector<8x16xbf16>
    %c0_24 = arith.constant 0 : index
    %c0_25 = arith.constant 0 : index
    %c19 = arith.constant 19 : index
    %25 = vector.load %arg1[%c0_24, %c0_25, %c19] : memref<1x16x326xbf16, #tpu.memory_space<vmem>>, vector<1x16x288xbf16>
    %26 = vector.shape_cast %25 : vector<1x16x288xbf16> to vector<16x288xbf16>
    %cst_26 = arith.constant dense<0.000000e+00> : vector<8x288xf32>
    %27 = tpu.matmul %24, %26, %cst_26 {dimension_numbers = #tpu.dot_dimension_numbers<[1], [0], [0], [1], [0, 0, 1, 1], [], []>} : vector<8x16xbf16>, vector<16x288xbf16>, vector<8x288xf32> -> vector<8x288xf32>
    %28 = arith.addf %23, %27 : vector<8x288xf32>
    %c40 = arith.constant 40 : index
    %c0_27 = arith.constant 0 : index
    %29 = vector.load %arg2[%c40, %c0_27] : memref<72x16xbf16, #tpu.memory_space<vmem>>, vector<8x16xbf16>
    %c0_28 = arith.constant 0 : index
    %c0_29 = arith.constant 0 : index
    %c20 = arith.constant 20 : index
    %30 = vector.load %arg1[%c0_28, %c0_29, %c20] : memref<1x16x326xbf16, #tpu.memory_space<vmem>>, vector<1x16x288xbf16>
    %31 = vector.shape_cast %30 : vector<1x16x288xbf16> to vector<16x288xbf16>
    %cst_30 = arith.constant dense<0.000000e+00> : vector<8x288xf32>
    %32 = tpu.matmul %29, %31, %cst_30 {dimension_numbers = #tpu.dot_dimension_numbers<[1], [0], [0], [1], [0, 0, 1, 1], [], []>} : vector<8x16xbf16>, vector<16x288xbf16>, vector<8x288xf32> -> vector<8x288xf32>
    %33 = arith.addf %28, %32 : vector<8x288xf32>
    %c48 = arith.constant 48 : index
    %c0_31 = arith.constant 0 : index
    %34 = vector.load %arg2[%c48, %c0_31] : memref<72x16xbf16, #tpu.memory_space<vmem>>, vector<8x16xbf16>
    %c0_32 = arith.constant 0 : index
    %c0_33 = arith.constant 0 : index
    %c36 = arith.constant 36 : index
    %35 = vector.load %arg1[%c0_32, %c0_33, %c36] : memref<1x16x326xbf16, #tpu.memory_space<vmem>>, vector<1x16x288xbf16>
    %36 = vector.shape_cast %35 : vector<1x16x288xbf16> to vector<16x288xbf16>
    %cst_34 = arith.constant dense<0.000000e+00> : vector<8x288xf32>
    %37 = tpu.matmul %34, %36, %cst_34 {dimension_numbers = #tpu.dot_dimension_numbers<[1], [0], [0], [1], [0, 0, 1, 1], [], []>} : vector<8x16xbf16>, vector<16x288xbf16>, vector<8x288xf32> -> vector<8x288xf32>
    %38 = arith.addf %33, %37 : vector<8x288xf32>
    %c56 = arith.constant 56 : index
    %c0_35 = arith.constant 0 : index
    %39 = vector.load %arg2[%c56, %c0_35] : memref<72x16xbf16, #tpu.memory_space<vmem>>, vector<8x16xbf16>
    %c0_36 = arith.constant 0 : index
    %c0_37 = arith.constant 0 : index
    %c37 = arith.constant 37 : index
    %40 = vector.load %arg1[%c0_36, %c0_37, %c37] : memref<1x16x326xbf16, #tpu.memory_space<vmem>>, vector<1x16x288xbf16>
    %41 = vector.shape_cast %40 : vector<1x16x288xbf16> to vector<16x288xbf16>
    %cst_38 = arith.constant dense<0.000000e+00> : vector<8x288xf32>
    %42 = tpu.matmul %39, %41, %cst_38 {dimension_numbers = #tpu.dot_dimension_numbers<[1], [0], [0], [1], [0, 0, 1, 1], [], []>} : vector<8x16xbf16>, vector<16x288xbf16>, vector<8x288xf32> -> vector<8x288xf32>
    %43 = arith.addf %38, %42 : vector<8x288xf32>
    %c64 = arith.constant 64 : index
    %c0_39 = arith.constant 0 : index
    %44 = vector.load %arg2[%c64, %c0_39] : memref<72x16xbf16, #tpu.memory_space<vmem>>, vector<8x16xbf16>
    %c0_40 = arith.constant 0 : index
    %c0_41 = arith.constant 0 : index
    %c38 = arith.constant 38 : index
    %45 = vector.load %arg1[%c0_40, %c0_41, %c38] : memref<1x16x326xbf16, #tpu.memory_space<vmem>>, vector<1x16x288xbf16>
    %46 = vector.shape_cast %45 : vector<1x16x288xbf16> to vector<16x288xbf16>
    %cst_42 = arith.constant dense<0.000000e+00> : vector<8x288xf32>
    %47 = tpu.matmul %44, %46, %cst_42 {dimension_numbers = #tpu.dot_dimension_numbers<[1], [0], [0], [1], [0, 0, 1, 1], [], []>} : vector<8x16xbf16>, vector<16x288xbf16>, vector<8x288xf32> -> vector<8x288xf32>
    %48 = arith.addf %43, %47 : vector<8x288xf32>
    %c0_43 = arith.constant 0 : index
    %c0_44 = arith.constant 0 : index
    %49 = vector.load %arg3[%c0_43, %c0_44] : memref<8x1xf32, #tpu.memory_space<vmem>>, vector<8x1xf32>
    %50 = vector.broadcast %49 : vector<8x1xf32> to vector<8x288xf32>
    %51 = arith.addf %48, %50 : vector<8x288xf32>
    %52 = arith.negf %51 : vector<8x288xf32>
    %53 = math.exp %52 : vector<8x288xf32>
    %cst_45 = arith.constant 1.000000e+00 : f32
    %54 = vector.broadcast %cst_45 : f32 to vector<8x288xf32>
    %55 = arith.addf %54, %53 : vector<8x288xf32>
    %56 = arith.divf %54, %55 : vector<8x288xf32>
    %57 = arith.mulf %51, %56 : vector<8x288xf32>
    %58 = vector.broadcast %0 : vector<1x288xf32> to vector<8x288xf32>
    %59 = arith.mulf %57, %58 : vector<8x288xf32>
    %60 = arith.truncf %59 : vector<8x288xf32> to vector<8x288xbf16>
    %c0_46 = arith.constant 0 : index
    %c19_47 = arith.constant 19 : index
    %61 = vector.load %arg10[%c0_46, %c19_47] : memref<8x326xbf16, #tpu.memory_space<vmem>>, vector<8x288xbf16>
    tpu.vector_store %arg10[%c0_46, %c19_47], %60 {strides = array<i32>} : memref<8x326xbf16, #tpu.memory_space<vmem>>, vector<8x288xbf16>,
    %c0_48 = arith.constant 0 : index
    %c0_49 = arith.constant 0 : index
    %62 = vector.load %arg4[%c0_48, %c0_49] : memref<72x8xbf16, #tpu.memory_space<vmem>>, vector<8x8xbf16>
    %c0_50 = arith.constant 0 : index
    %c0_51 = arith.constant 0 : index
    %63 = vector.load %arg10[%c0_50, %c0_51] : memref<8x326xbf16, #tpu.memory_space<vmem>>, vector<8x288xbf16>
    %cst_52 = arith.constant dense<0.000000e+00> : vector<8x288xf32>
    %64 = tpu.matmul %62, %63, %cst_52 {dimension_numbers = #tpu.dot_dimension_numbers<[1], [0], [0], [1], [0, 0, 1, 1], [], []>} : vector<8x8xbf16>, vector<8x288xbf16>, vector<8x288xf32> -> vector<8x288xf32>
    %c8_53 = arith.constant 8 : index
    %c0_54 = arith.constant 0 : index
    %65 = vector.load %arg4[%c8_53, %c0_54] : memref<72x8xbf16, #tpu.memory_space<vmem>>, vector<8x8xbf16>
    %c0_55 = arith.constant 0 : index
    %c1_56 = arith.constant 1 : index
    %66 = vector.load %arg10[%c0_55, %c1_56] : memref<8x326xbf16, #tpu.memory_space<vmem>>, vector<8x288xbf16>
    %cst_57 = arith.constant dense<0.000000e+00> : vector<8x288xf32>
    %67 = tpu.matmul %65, %66, %cst_57 {dimension_numbers = #tpu.dot_dimension_numbers<[1], [0], [0], [1], [0, 0, 1, 1], [], []>} : vector<8x8xbf16>, vector<8x288xbf16>, vector<8x288xf32> -> vector<8x288xf32>
    %68 = arith.addf %64, %67 : vector<8x288xf32>
    %c16_58 = arith.constant 16 : index
    %c0_59 = arith.constant 0 : index
    %69 = vector.load %arg4[%c16_58, %c0_59] : memref<72x8xbf16, #tpu.memory_space<vmem>>, vector<8x8xbf16>
    %c0_60 = arith.constant 0 : index
    %c2_61 = arith.constant 2 : index
    %70 = vector.load %arg10[%c0_60, %c2_61] : memref<8x326xbf16, #tpu.memory_space<vmem>>, vector<8x288xbf16>
    %cst_62 = arith.constant dense<0.000000e+00> : vector<8x288xf32>
    %71 = tpu.matmul %69, %70, %cst_62 {dimension_numbers = #tpu.dot_dimension_numbers<[1], [0], [0], [1], [0, 0, 1, 1], [], []>} : vector<8x8xbf16>, vector<8x288xbf16>, vector<8x288xf32> -> vector<8x288xf32>
    %72 = arith.addf %68, %71 : vector<8x288xf32>
    %c24_63 = arith.constant 24 : index
    %c0_64 = arith.constant 0 : index
    %73 = vector.load %arg4[%c24_63, %c0_64] : memref<72x8xbf16, #tpu.memory_space<vmem>>, vector<8x8xbf16>
    %c0_65 = arith.constant 0 : index
    %c18_66 = arith.constant 18 : index
    %74 = vector.load %arg10[%c0_65, %c18_66] : memref<8x326xbf16, #tpu.memory_space<vmem>>, vector<8x288xbf16>
    %cst_67 = arith.constant dense<0.000000e+00> : vector<8x288xf32>
    %75 = tpu.matmul %73, %74, %cst_67 {dimension_numbers = #tpu.dot_dimension_numbers<[1], [0], [0], [1], [0, 0, 1, 1], [], []>} : vector<8x8xbf16>, vector<8x288xbf16>, vector<8x288xf32> -> vector<8x288xf32>
    %76 = arith.addf %72, %75 : vector<8x288xf32>
    %c32_68 = arith.constant 32 : index
    %c0_69 = arith.constant 0 : index
    %77 = vector.load %arg4[%c32_68, %c0_69] : memref<72x8xbf16, #tpu.memory_space<vmem>>, vector<8x8xbf16>
    %c0_70 = arith.constant 0 : index
    %c19_71 = arith.constant 19 : index
    %78 = vector.load %arg10[%c0_70, %c19_71] : memref<8x326xbf16, #tpu.memory_space<vmem>>, vector<8x288xbf16>
    %cst_72 = arith.constant dense<0.000000e+00> : vector<8x288xf32>
    %79 = tpu.matmul %77, %78, %cst_72 {dimension_numbers = #tpu.dot_dimension_numbers<[1], [0], [0], [1], [0, 0, 1, 1], [], []>} : vector<8x8xbf16>, vector<8x288xbf16>, vector<8x288xf32> -> vector<8x288xf32>
    %80 = arith.addf %76, %79 : vector<8x288xf32>
    %c40_73 = arith.constant 40 : index
    %c0_74 = arith.constant 0 : index
    %81 = vector.load %arg4[%c40_73, %c0_74] : memref<72x8xbf16, #tpu.memory_space<vmem>>, vector<8x8xbf16>
    %c0_75 = arith.constant 0 : index
    %c20_76 = arith.constant 20 : index
    %82 = vector.load %arg10[%c0_75, %c20_76] : memref<8x326xbf16, #tpu.memory_space<vmem>>, vector<8x288xbf16>
    %cst_77 = arith.constant dense<0.000000e+00> : vector<8x288xf32>
    %83 = tpu.matmul %81, %82, %cst_77 {dimension_numbers = #tpu.dot_dimension_numbers<[1], [0], [0], [1], [0, 0, 1, 1], [], []>} : vector<8x8xbf16>, vector<8x288xbf16>, vector<8x288xf32> -> vector<8x288xf32>
    %84 = arith.addf %80, %83 : vector<8x288xf32>
    %c48_78 = arith.constant 48 : index
    %c0_79 = arith.constant 0 : index
    %85 = vector.load %arg4[%c48_78, %c0_79] : memref<72x8xbf16, #tpu.memory_space<vmem>>, vector<8x8xbf16>
    %c0_80 = arith.constant 0 : index
    %c36_81 = arith.constant 36 : index
    %86 = vector.load %arg10[%c0_80, %c36_81] : memref<8x326xbf16, #tpu.memory_space<vmem>>, vector<8x288xbf16>
    %cst_82 = arith.constant dense<0.000000e+00> : vector<8x288xf32>
    %87 = tpu.matmul %85, %86, %cst_82 {dimension_numbers = #tpu.dot_dimension_numbers<[1], [0], [0], [1], [0, 0, 1, 1], [], []>} : vector<8x8xbf16>, vector<8x288xbf16>, vector<8x288xf32> -> vector<8x288xf32>
    %88 = arith.addf %84, %87 : vector<8x288xf32>
    %c56_83 = arith.constant 56 : index
    %c0_84 = arith.constant 0 : index
    %89 = vector.load %arg4[%c56_83, %c0_84] : memref<72x8xbf16, #tpu.memory_space<vmem>>, vector<8x8xbf16>
    %c0_85 = arith.constant 0 : index
    %c37_86 = arith.constant 37 : index
    %90 = vector.load %arg10[%c0_85, %c37_86] : memref<8x326xbf16, #tpu.memory_space<vmem>>, vector<8x288xbf16>
    %cst_87 = arith.constant dense<0.000000e+00> : vector<8x288xf32>
    %91 = tpu.matmul %89, %90, %cst_87 {dimension_numbers = #tpu.dot_dimension_numbers<[1], [0], [0], [1], [0, 0, 1, 1], [], []>} : vector<8x8xbf16>, vector<8x288xbf16>, vector<8x288xf32> -> vector<8x288xf32>
    %92 = arith.addf %88, %91 : vector<8x288xf32>
    %c64_88 = arith.constant 64 : index
    %c0_89 = arith.constant 0 : index
    %93 = vector.load %arg4[%c64_88, %c0_89] : memref<72x8xbf16, #tpu.memory_space<vmem>>, vector<8x8xbf16>
    %c0_90 = arith.constant 0 : index
    %c38_91 = arith.constant 38 : index
    %94 = vector.load %arg10[%c0_90, %c38_91] : memref<8x326xbf16, #tpu.memory_space<vmem>>, vector<8x288xbf16>
    %cst_92 = arith.constant dense<0.000000e+00> : vector<8x288xf32>
    %95 = tpu.matmul %93, %94, %cst_92 {dimension_numbers = #tpu.dot_dimension_numbers<[1], [0], [0], [1], [0, 0, 1, 1], [], []>} : vector<8x8xbf16>, vector<8x288xbf16>, vector<8x288xf32> -> vector<8x288xf32>
    %96 = arith.addf %92, %95 : vector<8x288xf32>
    %c0_93 = arith.constant 0 : index
    %c0_94 = arith.constant 0 : index
    %97 = vector.load %arg5[%c0_93, %c0_94] : memref<8x1xf32, #tpu.memory_space<vmem>>, vector<8x1xf32>
    %98 = vector.broadcast %97 : vector<8x1xf32> to vector<8x288xf32>
    %99 = arith.addf %96, %98 : vector<8x288xf32>
    %100 = arith.negf %99 : vector<8x288xf32>
    %101 = math.exp %100 : vector<8x288xf32>
    %cst_95 = arith.constant 1.000000e+00 : f32
    %102 = vector.broadcast %cst_95 : f32 to vector<8x288xf32>
    %103 = arith.addf %102, %101 : vector<8x288xf32>
    %104 = arith.divf %102, %103 : vector<8x288xf32>
    %105 = arith.mulf %99, %104 : vector<8x288xf32>
    %c0_96 = arith.constant 0 : index
    %c0_97 = arith.constant 0 : index
    %106 = vector.load %arg6[%c0_96, %c0_97] : memref<8x8xbf16, #tpu.memory_space<vmem>>, vector<8x8xbf16>
    %107 = arith.truncf %105 : vector<8x288xf32> to vector<8x288xbf16>
    %cst_98 = arith.constant dense<0.000000e+00> : vector<8x288xf32>
    %108 = tpu.matmul %106, %107, %cst_98 {dimension_numbers = #tpu.dot_dimension_numbers<[1], [0], [0], [1], [0, 0, 1, 1], [], []>} : vector<8x8xbf16>, vector<8x288xbf16>, vector<8x288xf32> -> vector<8x288xf32>
    %c0_99 = arith.constant 0 : index
    %c0_100 = arith.constant 0 : index
    %109 = vector.load %arg7[%c0_99, %c0_100] : memref<8x1xf32, #tpu.memory_space<vmem>>, vector<8x1xf32>
    %110 = vector.broadcast %109 : vector<8x1xf32> to vector<8x288xf32>
    %111 = arith.addf %108, %110 : vector<8x288xf32>
    %c0_101 = arith.constant 0 : index
    %c0_102 = arith.constant 0 : index
    %c0_103 = arith.constant 0 : index
    %112 = vector.load %arg9[%c0_101, %c0_102, %c0_103] : memref<1x8x288xf32, #tpu.memory_space<vmem>>, vector<1x8x288xf32>
    %113 = vector.shape_cast %112 : vector<1x8x288xf32> to vector<8x288xf32>
    %114 = vector.shape_cast %111 : vector<8x288xf32> to vector<1x8x288xf32>
    tpu.vector_store %arg9[%c0_101, %c0_102, %c0_103], %114 {strides = array<i32>} : memref<1x8x288xf32, #tpu.memory_space<vmem>>, vector<1x8x288xf32>,
    return
  }
  func.func @transform_0(%arg0: i32) -> (i32, i32, i32) {
    %c0_i32 = arith.constant 0 : i32
    %c0_i32_0 = arith.constant 0 : i32
    %c0_i32_1 = arith.constant 0 : i32
    return %arg0, %c0_i32, %c0_i32_0 : i32, i32, i32
  }
  func.func @transform_1(%arg0: i32) -> (i32, i32) {
    %c0_i32 = arith.constant 0 : i32
    %c0_i32_0 = arith.constant 0 : i32
    %c0_i32_1 = arith.constant 0 : i32
    return %c0_i32, %c0_i32_0 : i32, i32
  }
  func.func @transform_2(%arg0: i32) -> (i32, i32) {
    %c0_i32 = arith.constant 0 : i32
    %c0_i32_0 = arith.constant 0 : i32
    %c0_i32_1 = arith.constant 0 : i32
    return %c0_i32, %c0_i32_0 : i32, i32
  }
  func.func @transform_3(%arg0: i32) -> (i32, i32) {
    %c0_i32 = arith.constant 0 : i32
    %c0_i32_0 = arith.constant 0 : i32
    %c0_i32_1 = arith.constant 0 : i32
    return %c0_i32, %c0_i32_0 : i32, i32
  }
  func.func @transform_4(%arg0: i32) -> (i32, i32) {
    %c0_i32 = arith.constant 0 : i32
    %c0_i32_0 = arith.constant 0 : i32
    %c0_i32_1 = arith.constant 0 : i32
    return %c0_i32, %c0_i32_0 : i32, i32
  }
  func.func @transform_5(%arg0: i32) -> (i32, i32) {
    %c0_i32 = arith.constant 0 : i32
    %c0_i32_0 = arith.constant 0 : i32
    %c0_i32_1 = arith.constant 0 : i32
    return %c0_i32, %c0_i32_0 : i32, i32
  }
  func.func @transform_6(%arg0: i32) -> (i32, i32) {
    %c0_i32 = arith.constant 0 : i32
    %c0_i32_0 = arith.constant 0 : i32
    %c0_i32_1 = arith.constant 0 : i32
    return %c0_i32, %c0_i32_0 : i32, i32
  }
  func.func @transform_7(%arg0: i32) -> (i32, i32) {
    %c0_i32 = arith.constant 0 : i32
    %c0_i32_0 = arith.constant 0 : i32
    %c0_i32_1 = arith.constant 0 : i32
    return %c0_i32, %c0_i32_0 : i32, i32
  }
  func.func @transform_8(%arg0: i32) -> (i32, i32, i32) {
    %c0_i32 = arith.constant 0 : i32
    %c0_i32_0 = arith.constant 0 : i32
    %c0_i32_1 = arith.constant 0 : i32
    return %arg0, %c0_i32, %c0_i32_0 : i32, i32, i32
  }
}

</mosaic_0001>

<llo_original>
// kernel: detection_head_forward.1
$region0: #{detection_head_forward.1}
  #allocation0 [shape = 'u32[]', space=smem, size = 0x4, offset = 0x4, fixed_abs, tag = 'smem constant byte address 0x4 - core index']
  #allocation1 [shape = 'u32[144,128]{1,0:T(1,128)}', space=vmem, size = 0x12000, scoped, tag = 'internal scratch']
  #allocation2 [shape = 'bf16[8,326]{1,0:T(8,128)(2,1)}', space=vmem, size = 0x1800, scoped, tag = 'scratch operand']
  %s0 = inlined_call_operand.vmem [shape: bf16[2,16,326], index: 0, kind: input, shape index: {}]
  %s1 = inlined_call_operand.vmem [shape: bf16[72,16], index: 1, kind: input, shape index: {}]
  %s2 = inlined_call_operand.vmem [shape: f32[8,1], index: 2, kind: input, shape index: {}]
  %s3 = inlined_call_operand.vmem [shape: bf16[72,8], index: 3, kind: input, shape index: {}]
  %s4 = inlined_call_operand.vmem [shape: f32[8,1], index: 4, kind: input, shape index: {}]
  %s5 = inlined_call_operand.vmem [shape: bf16[8,8], index: 5, kind: input, shape index: {}]
  %s6 = inlined_call_operand.vmem [shape: f32[8,1], index: 6, kind: input, shape index: {}]
  %s7 = inlined_call_operand.vmem [shape: f32[1,288], index: 7, kind: input, shape index: {}]
  %s8 = inlined_call_operand.vmem [shape: f32[2,8,288], index: 8, kind: output, shape index: {}]
  %s9 = sld [smem:[#allocation0]]
  $region65: #{detection_head_forward.1} parent=0
    _
  %s11 = ssub.s32 1, %s9
  %s12 = scalar_select 0, %s11, %s9
  loop: start=0, step=1, limit=4
  $region2: #{detection_head_forward.1} parent=0 // loop_pre_header
    _
  $region3: #{detection_head_forward.1} parent=0 // loop_header
    %s14 = sphi 0, %s18
    %p15 = scmp.ge.s32.totalorder %s14, 4
    %s24 = sphi 0, %s26
    %s27 = sphi 0, %s24
    %s28 = sphi 0, %s27
    %s44 = sphi 0, %s28
    %s48 = sphi 0, %s48
    %s50 = sphi 0, %s48
    %s51 = sphi 0, %s50
    %s65 = sphi 0, %s51
    %s69 = sphi 0, %s69
    %s71 = sphi 0, %s69
    %s72 = sphi 0, %s71
    %s86 = sphi 0, %s72
    %s90 = sphi 0, %s90
    %s92 = sphi 0, %s90
    %s93 = sphi 0, %s92
    %s107 = sphi 0, %s93
    %s111 = sphi 0, %s111
    %s113 = sphi 0, %s111
    %s114 = sphi 0, %s113
    %s128 = sphi 0, %s114
    %s132 = sphi 0, %s132
    %s134 = sphi 0, %s132
    %s135 = sphi 0, %s134
    %s149 = sphi 0, %s135
    %s153 = sphi 0, %s153
    %s155 = sphi 0, %s153
    %s156 = sphi 0, %s155
    %s170 = sphi 0, %s156
    %s174 = sphi 0, %s174
    %s176 = sphi 0, %s174
    %s177 = sphi 0, %s176
    %s191 = sphi 0, %s177
    %s197 = sphi 0, %s199
    %s200 = sphi 0, %s197
    %s201 = sphi 0, %s200
    %s217 = sphi 0, %s201
  $region4: #{detection_head_forward.1} parent=0 // loop_header_branch
    %17 = sbr.rel (%p15) target = $region8
  $region5: #{detection_head_forward.1} parent=0 // loop_body
    %s19 = ssub.s32 %s14, 1
    %s20 = ssub.s32 %s14, 2
    %s21 = sadd.s32 %s14, 1
    %s22 = ssub.s32 %s14, %s21
    %p23 = scmp.eq.s32.totalorder %s22, 0
    %s25 = sadd.s32 %s24, 1
    %s26 = scalar_select %p23, %s24, %s25
    %p29 = pneg %p23
    %p30 = scmp.eq.s32.totalorder %s14, 1
    %p31 = por %p29, %p30
    %p32 = scmp.ne.s32.totalorder %s24, %s27
    %p33 = scmp.eq.s32.totalorder %s14, 0
    %p34 = por %p32, %p33
    %p35 = scmp.ne.s32.totalorder %s24, %s27
    %p36 = scmp.eq.s32.totalorder %s19, 1
    %p37 = por %p35, %p36
    %p38 = scmp.ne.s32.totalorder %s27, %s28
    %p39 = scmp.eq.s32.totalorder %s19, 0
    %p40 = por %p38, %p39
    %p41 = scmp.ne.s32.totalorder %s27, %s28
    %p42 = scmp.eq.s32.totalorder %s20, 1
    %p43 = por %p41, %p42
    %p45 = scmp.ne.s32.totalorder %s28, %s44
    %p46 = scmp.eq.s32.totalorder %s20, 0
    %p47 = por %p45, %p46
    %s49 = sadd.s32 %s48, 1
    %p52 = scmp.eq.s32.totalorder %s14, 1
    %p53 = scmp.ne.s32.totalorder %s48, %s50
    %p54 = scmp.eq.s32.totalorder %s14, 0
    %p55 = por %p53, %p54
    %p56 = scmp.ne.s32.totalorder %s48, %s50
    %p57 = scmp.eq.s32.totalorder %s19, 1
    %p58 = por %p56, %p57
    %p59 = scmp.ne.s32.totalorder %s50, %s51
    %p60 = scmp.eq.s32.totalorder %s19, 0
    %p61 = por %p59, %p60
    %p62 = scmp.ne.s32.totalorder %s50, %s51
    %p63 = scmp.eq.s32.totalorder %s20, 1
    %p64 = por %p62, %p63
    %p66 = scmp.ne.s32.totalorder %s51, %s65
    %p67 = scmp.eq.s32.totalorder %s20, 0
    %p68 = por %p66, %p67
    %s70 = sadd.s32 %s69, 1
    %p73 = scmp.eq.s32.totalorder %s14, 1
    %p74 = scmp.ne.s32.totalorder %s69, %s71
    %p75 = scmp.eq.s32.totalorder %s14, 0
    %p76 = por %p74, %p75
    %p77 = scmp.ne.s32.totalorder %s69, %s71
    %p78 = scmp.eq.s32.totalorder %s19, 1
    %p79 = por %p77, %p78
    %p80 = scmp.ne.s32.totalorder %s71, %s72
    %p81 = scmp.eq.s32.totalorder %s19, 0
    %p82 = por %p80, %p81
    %p83 = scmp.ne.s32.totalorder %s71, %s72
    %p84 = scmp.eq.s32.totalorder %s20, 1
    %p85 = por %p83, %p84
    %p87 = scmp.ne.s32.totalorder %s72, %s86
    %p88 = scmp.eq.s32.totalorder %s20, 0
    %p89 = por %p87, %p88
    %s91 = sadd.s32 %s90, 1
    %p94 = scmp.eq.s32.totalorder %s14, 1
    %p95 = scmp.ne.s32.totalorder %s90, %s92
    %p96 = scmp.eq.s32.totalorder %s14, 0
    %p97 = por %p95, %p96
    %p98 = scmp.ne.s32.totalorder %s90, %s92
    %p99 = scmp.eq.s32.totalorder %s19, 1
    %p100 = por %p98, %p99
    %p101 = scmp.ne.s32.totalorder %s92, %s93
    %p102 = scmp.eq.s32.totalorder %s19, 0
    %p103 = por %p101, %p102
    %p104 = scmp.ne.s32.totalorder %s92, %s93
    %p105 = scmp.eq.s32.totalorder %s20, 1
    %p106 = por %p104, %p105
    %p108 = scmp.ne.s32.totalorder %s93, %s107
    %p109 = scmp.eq.s32.totalorder %s20, 0
    %p110 = por %p108, %p109
    %s112 = sadd.s32 %s111, 1
    %p115 = scmp.eq.s32.totalorder %s14, 1
    %p116 = scmp.ne.s32.totalorder %s111, %s113
    %p117 = scmp.eq.s32.totalorder %s14, 0
    %p118 = por %p116, %p117
    %p119 = scmp.ne.s32.totalorder %s111, %s113
    %p120 = scmp.eq.s32.totalorder %s19, 1
    %p121 = por %p119, %p120
    %p122 = scmp.ne.s32.totalorder %s113, %s114
    %p123 = scmp.eq.s32.totalorder %s19, 0
    %p124 = por %p122, %p123
    %p125 = scmp.ne.s32.totalorder %s113, %s114
    %p126 = scmp.eq.s32.totalorder %s20, 1
    %p127 = por %p125, %p126
    %p129 = scmp.ne.s32.totalorder %s114, %s128
    %p130 = scmp.eq.s32.totalorder %s20, 0
    %p131 = por %p129, %p130
    %s133 = sadd.s32 %s132, 1
    %p136 = scmp.eq.s32.totalorder %s14, 1
    %p137 = scmp.ne.s32.totalorder %s132, %s134
    %p138 = scmp.eq.s32.totalorder %s14, 0
    %p139 = por %p137, %p138
    %p140 = scmp.ne.s32.totalorder %s132, %s134
    %p141 = scmp.eq.s32.totalorder %s19, 1
    %p142 = por %p140, %p141
    %p143 = scmp.ne.s32.totalorder %s134, %s135
    %p144 = scmp.eq.s32.totalorder %s19, 0
    %p145 = por %p143, %p144
    %p146 = scmp.ne.s32.totalorder %s134, %s135
    %p147 = scmp.eq.s32.totalorder %s20, 1
    %p148 = por %p146, %p147
    %p150 = scmp.ne.s32.totalorder %s135, %s149
    %p151 = scmp.eq.s32.totalorder %s20, 0
    %p152 = por %p150, %p151
    %s154 = sadd.s32 %s153, 1
    %p157 = scmp.eq.s32.totalorder %s14, 1
    %p158 = scmp.ne.s32.totalorder %s153, %s155
    %p159 = scmp.eq.s32.totalorder %s14, 0
    %p160 = por %p158, %p159
    %p161 = scmp.ne.s32.totalorder %s153, %s155
    %p162 = scmp.eq.s32.totalorder %s19, 1
    %p163 = por %p161, %p162
    %p164 = scmp.ne.s32.totalorder %s155, %s156
    %p165 = scmp.eq.s32.totalorder %s19, 0
    %p166 = por %p164, %p165
    %p167 = scmp.ne.s32.totalorder %s155, %s156
    %p168 = scmp.eq.s32.totalorder %s20, 1
    %p169 = por %p167, %p168
    %p171 = scmp.ne.s32.totalorder %s156, %s170
    %p172 = scmp.eq.s32.totalorder %s20, 0
    %p173 = por %p171, %p172
    %s175 = sadd.s32 %s174, 1
    %p178 = scmp.eq.s32.totalorder %s14, 1
    %p179 = scmp.ne.s32.totalorder %s174, %s176
    %p180 = scmp.eq.s32.totalorder %s14, 0
    %p181 = por %p179, %p180
    %p182 = scmp.ne.s32.totalorder %s174, %s176
    %p183 = scmp.eq.s32.totalorder %s19, 1
    %p184 = por %p182, %p183
    %p185 = scmp.ne.s32.totalorder %s176, %s177
    %p186 = scmp.eq.s32.totalorder %s19, 0
    %p187 = por %p185, %p186
    %p188 = scmp.ne.s32.totalorder %s176, %s177
    %p189 = scmp.eq.s32.totalorder %s20, 1
    %p190 = por %p188, %p189
    %p192 = scmp.ne.s32.totalorder %s177, %s191
    %p193 = scmp.eq.s32.totalorder %s20, 0
    %p194 = por %p192, %p193
    %s195 = ssub.s32 %s14, %s21
    %p196 = scmp.eq.s32.totalorder %s195, 0
    %s198 = sadd.s32 %s197, 1
    %s199 = scalar_select %p196, %s197, %s198
    %p202 = pneg %p196
    %p203 = scmp.eq.s32.totalorder %s14, 1
    %p204 = por %p202, %p203
    %p205 = scmp.ne.s32.totalorder %s197, %s200
    %p206 = scmp.eq.s32.totalorder %s14, 0
    %p207 = por %p205, %p206
    %p208 = scmp.ne.s32.totalorder %s197, %s200
    %p209 = scmp.eq.s32.totalorder %s19, 1
    %p210 = por %p208, %p209
    %p211 = scmp.ne.s32.totalorder %s200, %s201
    %p212 = scmp.eq.s32.totalorder %s19, 0
    %p213 = por %p211, %p212
    %p214 = scmp.ne.s32.totalorder %s200, %s201
    %p215 = scmp.eq.s32.totalorder %s20, 1
    %p216 = por %p214, %p215
    %p218 = scmp.ne.s32.totalorder %s201, %s217
    %p219 = scmp.eq.s32.totalorder %s20, 0
    %p220 = por %p218, %p219
    %p221 = scmp.le.s32.totalorder 1, %s14
    %p222 = scmp.lt.s32.totalorder %s14, 3
    %p223 = pnand %p221, %p222
    %p224 = pneg %p223
    // Predicated region
    $region9: #{detection_head_forward.1} parent=5 // pred_check
      _
    $region10: #{detection_head_forward.1} parent=5 // pred_check_branch
      %226 = sbr.rel (%p223) target = $region12
    $region11: #{detection_head_forward.1} parent=5 // pred_region
      %s227 = ssub.s32 %s14, 1
      // Predicated region
      $region13: #{detection_head_forward.1} parent=11 // pred_check
        %p228 = pneg %p61
      $region14: #{detection_head_forward.1} parent=11 // pred_check_branch
        %230 = sbr.rel (%p228) target = $region16
      $region15: #{detection_head_forward.1} parent=11 // pred_region
        _
      $region16: #{detection_head_forward.1} parent=11 // pred_fallthru
        _
      // Predicated region
      $region17: #{detection_head_forward.1} parent=11 // pred_check
        %p231 = pneg %p82
      $region18: #{detection_head_forward.1} parent=11 // pred_check_branch
        %233 = sbr.rel (%p231) target = $region20
      $region19: #{detection_head_forward.1} parent=11 // pred_region
        _
      $region20: #{detection_head_forward.1} parent=11 // pred_fallthru
        _
      // Predicated region
      $region21: #{detection_head_forward.1} parent=11 // pred_check
        %p234 = pneg %p103
      $region22: #{detection_head_forward.1} parent=11 // pred_check_branch
        %236 = sbr.rel (%p234) target = $region24
      $region23: #{detection_head_forward.1} parent=11 // pred_region
        _
      $region24: #{detection_head_forward.1} parent=11 // pred_fallthru
        _
      // Predicated region
      $region25: #{detection_head_forward.1} parent=11 // pred_check
        %p237 = pneg %p124
      $region26: #{detection_head_forward.1} parent=11 // pred_check_branch
        %239 = sbr.rel (%p237) target = $region28
      $region27: #{detection_head_forward.1} parent=11 // pred_region
        _
      $region28: #{detection_head_forward.1} parent=11 // pred_fallthru
        _
      // Predicated region
      $region29: #{detection_head_forward.1} parent=11 // pred_check
        %p240 = pneg %p145
      $region30: #{detection_head_forward.1} parent=11 // pred_check_branch
        %242 = sbr.rel (%p240) target = $region32
      $region31: #{detection_head_forward.1} parent=11 // pred_region
        _
      $region32: #{detection_head_forward.1} parent=11 // pred_fallthru
        _
      // Predicated region
      $region33: #{detection_head_forward.1} parent=11 // pred_check
        %p243 = pneg %p166
      $region34: #{detection_head_forward.1} parent=11 // pred_check_branch
        %245 = sbr.rel (%p243) target = $region36
      $region35: #{detection_head_forward.1} parent=11 // pred_region
        _
      $region36: #{detection_head_forward.1} parent=11 // pred_fallthru
        _
      // Predicated region
      $region37: #{detection_head_forward.1} parent=11 // pred_check
        %p246 = pneg %p187
      $region38: #{detection_head_forward.1} parent=11 // pred_check_branch
        %248 = sbr.rel (%p246) target = $region40
      $region39: #{detection_head_forward.1} parent=11 // pred_region
        _
      $region40: #{detection_head_forward.1} parent=11 // pred_fallthru
        _
    $region12: #{detection_head_forward.1} parent=5 // pred_fallthru
      _
    %p249 = scmp.lt.s32.totalorder %s14, 2
    // Predicated region
    $region41: #{detection_head_forward.1} parent=5 // pred_check
      %p250 = pneg %p249
    $region42: #{detection_head_forward.1} parent=5 // pred_check_branch
      %252 = sbr.rel (%p250) target = $region44
    $region43: #{detection_head_forward.1} parent=5 // pred_region
      // Predicated region
      $region45: #{detection_head_forward.1} parent=43 // pred_check
        %p253 = pneg %p34
      $region46: #{detection_head_forward.1} parent=43 // pred_check_branch
        %255 = sbr.rel (%p253) target = $region48
      $region47: #{detection_head_forward.1} parent=43 // pred_region
        %p256 = scmp.lt.s32.totalorder %s14, 1
        %s257 = scalar_select %p256, %s14, 1
        %s258 = smul.addr %s257, 6
        %s259 = smul.addr %s258, 4
        %s260 = scalar_lea.vmem %s0, %s259
      $region48: #{detection_head_forward.1} parent=43 // pred_fallthru
        _
    $region44: #{detection_head_forward.1} parent=5 // pred_fallthru
      _
    %p261 = scmp.le.s32.totalorder 1, %s14
    %p262 = scmp.lt.s32.totalorder %s14, 3
    %p263 = pnand %p261, %p262
    %p264 = pneg %p263
    // Predicated region
    $region49: #{detection_head_forward.1} parent=5 // pred_check
      _
    $region50: #{detection_head_forward.1} parent=5 // pred_check_branch
      %266 = sbr.rel (%p263) target = $region52
    $region51: #{detection_head_forward.1} parent=5 // pred_region
      %s267 = ssub.s32 %s14, 1
      %p268 = scmp.lt.s32.totalorder %s19, 1
      %s269 = scalar_select %p268, %s19, 1
      %s270 = smul.addr %s269, 6
      %s271 = smul.addr %s270, 4
      %s272 = scalar_lea.vmem %s0, %s271
      %p273 = pneg %p40
      %p274 = pneg %p37
      %p275 = pneg %p61
      %p276 = pneg %p58
      %p277 = pneg %p82
      %p278 = pneg %p79
      %p279 = pneg %p103
      %p280 = pneg %p100
      %p281 = pneg %p124
      %p282 = pneg %p121
      %p283 = pneg %p145
      %p284 = pneg %p142
      %p285 = pneg %p166
      %p286 = pneg %p163
      %p287 = pneg %p187
      %p288 = pneg %p184
      %p289 = pneg %p213
      %p290 = pneg %p210
      %p291 = scmp.lt.s32.totalorder %s19, 1
      %s292 = scalar_select %p291, %s19, 1
      %s293 = smul.addr %s292, 3
      %s294 = smul.addr %s293, 8
      %s295 = scalar_lea.vmem %s8, %s294
      %p296 = scmp.lt.s32.totalorder %s19, 1
      %s297 = scalar_select %p296, %s19, 1
      %s298 = smul.addr %s297, 6
      %s299 = smul.addr %s298, 4
      %s300 = scalar_lea.vmem %s0, %s299
      %p301 = scmp.lt.s32.totalorder %s19, 1
      %s302 = scalar_select %p301, %s19, 1
      %s303 = smul.addr %s302, 3
      %s304 = smul.addr %s303, 8
      %s305 = scalar_lea.vmem %s8, %s304
      %v307 = vld [vmem:[%s7] sm:$0x7]
      %vm308 = vcmask 150528
      %309 = vst.msk [vmem:[#allocation2] sm:$0xf] %vm308, 0
      %vm310 = vcmask 568728
      %311 = vst.msk [vmem:[#allocation2 + $0x8] sm:$0xf] %vm310, 0
      %v312 = vld [vmem:[%s1] sm:$0xf]
      %v313 = vld [vmem:[%s300] sm:$0xff]
      %v314 = vld [vmem:[%s300 + $0x8] sm:$0xf]
      %v315 = vld [vmem:[%s300 + $0xc] sm:$0xff]
      %v316 = vld [vmem:[%s300 + $0x14] sm:$0xf]
      %v317 = vld [vmem:[%s1 + $0x4] sm:$0xf]
      %v322 = vunpack.c.l.b16 %v313
      %v323 = vunpack.c.h.b16 %v313
      %v324 = vunpack.c.l.b16 %v314
      %v325 = vunpack.c.l.b16 %v315
      %v326 = vunpack.c.h.b16 %v315
      %v327 = vunpack.c.l.b16 %v316
      %v328 = vpack.c.b16 %v325, %v322
      %v329 = vpack.c.b16 %v326, %v323
      %v330 = vpack.c.b16 %v327, %v324
      %331 = vrot.lane.b32.xlu0 %v328, 127
      %v332 = vpop.permute.xlu0 %331
      %333 = vrot.lane.b32.xlu0 %v329, 127
      %v334 = vpop.permute.xlu0 %333
      %335 = vrot.lane.b32.xlu0 %v330, 127
      %v336 = vpop.permute.xlu0 %335
      %vm337 = vcmask 1039360
      %v338 = vsel %vm337, %v332, %v334
      %v339 = vsel %vm337, %v334, %v336
      %vm343 = vcmask 130048
      %v345 = vsel %vm343, %v317, 0
      %347 = vmatprep.subr.bf16.mxu0 %v339
      %348 = vmatpush1.bf16.msra.mxu0 %v338
      %349 = vmatprep.subr.bf16.mxu0 0
      %350 = vmatpush1.bf16.msra.mxu0 0
      %351 = vmatprep.subr.bf16.mxu0 0
      %352 = vmatpush1.bf16.msra.mxu0 0
      %353 = vmatprep.subr.bf16.mxu0 0
      %354 = vmatpush1.bf16.msra.mxu0 0
      %355 = vmatprep.subr.bf16.mxu0 0
      %356 = vmatpush1.bf16.msra.mxu0 0
      %357 = vmatprep.subr.bf16.mxu0 0
      %358 = vmatpush1.bf16.msra.mxu0 0
      %359 = vmatprep.subr.bf16.mxu0 0
      %360 = vmatpush1.bf16.msra.mxu0 0
      %361 = vmatprep.subr.bf16.mxu0 0
      %362 = vmatpush1.bf16.msra.mxu0 0
      %363 = vmatprep.subr.bf16.mxu0 0
      %364 = vmatpush1.bf16.msra.mxu0 0
      %365 = vmatprep.subr.bf16.mxu0 0
      %366 = vmatpush1.bf16.msra.mxu0 0
      %367 = vmatprep.subr.bf16.mxu0 0
      %368 = vmatpush1.bf16.msra.mxu0 0
      %369 = vmatprep.subr.bf16.mxu0 0
      %370 = vmatpush1.bf16.msra.mxu0 0
      %371 = vmatprep.subr.bf16.mxu0 0
      %372 = vmatpush1.bf16.msra.mxu0 0
      %373 = vmatprep.subr.bf16.mxu0 0
      %374 = vmatpush1.bf16.msra.mxu0 0
      %375 = vmatprep.subr.bf16.mxu0 0
      %376 = vmatpush1.bf16.msra.mxu0 0
      %377 = vmatprep.subr.bf16.mxu0 0
      %378 = vmatpush1.bf16.msra.mxu0 0
      %379 = vmatprep.mubr.bf16.mxu0 0
      %380 = vmatmul.mubr.bf16.gmra.mrb[0].mxu0 %v345
      %v381 = vpop.f32.mrb[0].mxu0
      %v382 = vadd.f32 0.0, %v381
      %v383 = vpop.f32.mrb[0].mxu0
      %v384 = vadd.f32 0.0, %v383
      %v385 = vpop.f32.mrb[0].mxu0
      %v386 = vpop.f32.mrb[0].mxu0
      %387 = vdwg.mxu0
      %388 = vmatprep.subr.bf16.mxu0 0
      %389 = vmatpush1.bf16.msra.mxu0 %v336
      %390 = vmatprep.subr.bf16.mxu0 0
      %391 = vmatpush1.bf16.msra.mxu0 0
      %392 = vmatprep.subr.bf16.mxu0 0
      %393 = vmatpush1.bf16.msra.mxu0 0
      %394 = vmatprep.subr.bf16.mxu0 0
      %395 = vmatpush1.bf16.msra.mxu0 0
      %396 = vmatprep.subr.bf16.mxu0 0
      %397 = vmatpush1.bf16.msra.mxu0 0
      %398 = vmatprep.subr.bf16.mxu0 0
      %399 = vmatpush1.bf16.msra.mxu0 0
      %400 = vmatprep.subr.bf16.mxu0 0
      %401 = vmatpush1.bf16.msra.mxu0 0
      %402 = vmatprep.subr.bf16.mxu0 0
      %403 = vmatpush1.bf16.msra.mxu0 0
      %404 = vmatprep.subr.bf16.mxu0 0
      %405 = vmatpush1.bf16.msra.mxu0 0
      %406 = vmatprep.subr.bf16.mxu0 0
      %407 = vmatpush1.bf16.msra.mxu0 0
      %408 = vmatprep.subr.bf16.mxu0 0
      %409 = vmatpush1.bf16.msra.mxu0 0
      %410 = vmatprep.subr.bf16.mxu0 0
      %411 = vmatpush1.bf16.msra.mxu0 0
      %412 = vmatprep.subr.bf16.mxu0 0
      %413 = vmatpush1.bf16.msra.mxu0 0
      %414 = vmatprep.subr.bf16.mxu0 0
      %415 = vmatpush1.bf16.msra.mxu0 0
      %416 = vmatprep.subr.bf16.mxu0 0
      %417 = vmatpush1.bf16.msra.mxu0 0
      %418 = vmatprep.subr.bf16.mxu0 0
      %419 = vmatpush1.bf16.msra.mxu0 0
      %420 = vmatprep.mubr.bf16.mxu0 0
      %421 = vmatmul.mubr.bf16.gmra.mrb[0].mxu0 %v345
      %v422 = vpop.f32.mrb[0].mxu0
      %v423 = vadd.f32 0.0, %v422
      %v424 = vpop.f32.mrb[0].mxu0
      %v425 = vpop.f32.mrb[0].mxu0
      %v426 = vpop.f32.mrb[0].mxu0
      %427 = vdwg.mxu0
      %v432 = vsel %vm343, %v312, 0
      %434 = vmatprep.subr.bf16.mxu0 %v329
      %435 = vmatpush1.bf16.msra.mxu0 %v328
      %436 = vmatprep.subr.bf16.mxu0 0
      %437 = vmatpush1.bf16.msra.mxu0 0
      %438 = vmatprep.subr.bf16.mxu0 0
      %439 = vmatpush1.bf16.msra.mxu0 0
      %440 = vmatprep.subr.bf16.mxu0 0
      %441 = vmatpush1.bf16.msra.mxu0 0
      %442 = vmatprep.subr.bf16.mxu0 0
      %443 = vmatpush1.bf16.msra.mxu0 0
      %444 = vmatprep.subr.bf16.mxu0 0
      %445 = vmatpush1.bf16.msra.mxu0 0
      %446 = vmatprep.subr.bf16.mxu0 0
      %447 = vmatpush1.bf16.msra.mxu0 0
      %448 = vmatprep.subr.bf16.mxu0 0
      %449 = vmatpush1.bf16.msra.mxu0 0
      %450 = vmatprep.subr.bf16.mxu0 0
      %451 = vmatpush1.bf16.msra.mxu0 0
      %452 = vmatprep.subr.bf16.mxu0 0
      %453 = vmatpush1.bf16.msra.mxu0 0
      %454 = vmatprep.subr.bf16.mxu0 0
      %455 = vmatpush1.bf16.msra.mxu0 0
      %456 = vmatprep.subr.bf16.mxu0 0
      %457 = vmatpush1.bf16.msra.mxu0 0
      %458 = vmatprep.subr.bf16.mxu0 0
      %459 = vmatpush1.bf16.msra.mxu0 0
      %460 = vmatprep.subr.bf16.mxu0 0
      %461 = vmatpush1.bf16.msra.mxu0 0
      %462 = vmatprep.subr.bf16.mxu0 0
      %463 = vmatpush1.bf16.msra.mxu0 0
      %464 = vmatprep.subr.bf16.mxu0 0
      %465 = vmatpush1.bf16.msra.mxu0 0
      %466 = vmatprep.mubr.bf16.mxu0 0
      %467 = vmatmul.mubr.bf16.gmra.mrb[0].mxu0 %v432
      %v468 = vpop.f32.mrb[0].mxu0
      %v469 = vadd.f32 %v382, %v468
      %v470 = vpop.f32.mrb[0].mxu0
      %v471 = vadd.f32 %v384, %v470
      %v472 = vpop.f32.mrb[0].mxu0
      %v473 = vpop.f32.mrb[0].mxu0
      %474 = vdwg.mxu0
      %475 = vmatprep.subr.bf16.mxu0 0
      %476 = vmatpush1.bf16.msra.mxu0 %v330
      %477 = vmatprep.subr.bf16.mxu0 0
      %478 = vmatpush1.bf16.msra.mxu0 0
      %479 = vmatprep.subr.bf16.mxu0 0
      %480 = vmatpush1.bf16.msra.mxu0 0
      %481 = vmatprep.subr.bf16.mxu0 0
      %482 = vmatpush1.bf16.msra.mxu0 0
      %483 = vmatprep.subr.bf16.mxu0 0
      %484 = vmatpush1.bf16.msra.mxu0 0
      %485 = vmatprep.subr.bf16.mxu0 0
      %486 = vmatpush1.bf16.msra.mxu0 0
      %487 = vmatprep.subr.bf16.mxu0 0
      %488 = vmatpush1.bf16.msra.mxu0 0
      %489 = vmatprep.subr.bf16.mxu0 0
      %490 = vmatpush1.bf16.msra.mxu0 0
      %491 = vmatprep.subr.bf16.mxu0 0
      %492 = vmatpush1.bf16.msra.mxu0 0
      %493 = vmatprep.subr.bf16.mxu0 0
      %494 = vmatpush1.bf16.msra.mxu0 0
      %495 = vmatprep.subr.bf16.mxu0 0
      %496 = vmatpush1.bf16.msra.mxu0 0
      %497 = vmatprep.subr.bf16.mxu0 0
      %498 = vmatpush1.bf16.msra.mxu0 0
      %499 = vmatprep.subr.bf16.mxu0 0
      %500 = vmatpush1.bf16.msra.mxu0 0
      %501 = vmatprep.subr.bf16.mxu0 0
      %502 = vmatpush1.bf16.msra.mxu0 0
      %503 = vmatprep.subr.bf16.mxu0 0
      %504 = vmatpush1.bf16.msra.mxu0 0
      %505 = vmatprep.subr.bf16.mxu0 0
      %506 = vmatpush1.bf16.msra.mxu0 0
      %507 = vmatprep.mubr.bf16.mxu0 0
      %508 = vmatmul.mubr.bf16.gmra.mrb[0].mxu0 %v432
      %v509 = vpop.f32.mrb[0].mxu0
      %v510 = vadd.f32 %v423, %v509
      %v511 = vpop.f32.mrb[0].mxu0
      %v512 = vpop.f32.mrb[0].mxu0
      %v513 = vpop.f32.mrb[0].mxu0
      %514 = vdwg.mxu0
      %v515 = vld [vmem:[%s1 + $0x8] sm:$0xf]
      %516 = vrot.lane.b32.xlu0 %v328, 126
      %v517 = vpop.permute.xlu0 %516
      %518 = vrot.lane.b32.xlu0 %v329, 126
      %v519 = vpop.permute.xlu0 %518
      %520 = vrot.lane.b32.xlu0 %v330, 126
      %v521 = vpop.permute.xlu0 %520
      %vm522 = vcmask 1031168
      %v523 = vsel %vm522, %v517, %v519
      %v524 = vsel %vm522, %v519, %v521
      %v529 = vsel %vm343, %v515, 0
      %531 = vmatprep.subr.bf16.mxu0 %v524
      %532 = vmatpush1.bf16.msra.mxu0 %v523
      %533 = vmatprep.subr.bf16.mxu0 0
      %534 = vmatpush1.bf16.msra.mxu0 0
      %535 = vmatprep.subr.bf16.mxu0 0
      %536 = vmatpush1.bf16.msra.mxu0 0
      %537 = vmatprep.subr.bf16.mxu0 0
      %538 = vmatpush1.bf16.msra.mxu0 0
      %539 = vmatprep.subr.bf16.mxu0 0
      %540 = vmatpush1.bf16.msra.mxu0 0
      %541 = vmatprep.subr.bf16.mxu0 0
      %542 = vmatpush1.bf16.msra.mxu0 0
      %543 = vmatprep.subr.bf16.mxu0 0
      %544 = vmatpush1.bf16.msra.mxu0 0
      %545 = vmatprep.subr.bf16.mxu0 0
      %546 = vmatpush1.bf16.msra.mxu0 0
      %547 = vmatprep.subr.bf16.mxu0 0
      %548 = vmatpush1.bf16.msra.mxu0 0
      %549 = vmatprep.subr.bf16.mxu0 0
      %550 = vmatpush1.bf16.msra.mxu0 0
      %551 = vmatprep.subr.bf16.mxu0 0
      %552 = vmatpush1.bf16.msra.mxu0 0
      %553 = vmatprep.subr.bf16.mxu0 0
      %554 = vmatpush1.bf16.msra.mxu0 0
      %555 = vmatprep.subr.bf16.mxu0 0
      %556 = vmatpush1.bf16.msra.mxu0 0
      %557 = vmatprep.subr.bf16.mxu0 0
      %558 = vmatpush1.bf16.msra.mxu0 0
      %559 = vmatprep.subr.bf16.mxu0 0
      %560 = vmatpush1.bf16.msra.mxu0 0
      %561 = vmatprep.subr.bf16.mxu0 0
      %562 = vmatpush1.bf16.msra.mxu0 0
      %563 = vmatprep.mubr.bf16.mxu0 0
      %564 = vmatmul.mubr.bf16.gmra.mrb[0].mxu0 %v529
      %v565 = vpop.f32.mrb[0].mxu0
      %v566 = vadd.f32 0.0, %v565
      %v567 = vpop.f32.mrb[0].mxu0
      %v568 = vadd.f32 0.0, %v567
      %v569 = vpop.f32.mrb[0].mxu0
      %v570 = vpop.f32.mrb[0].mxu0
      %571 = vdwg.mxu0
      %572 = vmatprep.subr.bf16.mxu0 0
      %573 = vmatpush1.bf16.msra.mxu0 %v521
      %574 = vmatprep.subr.bf16.mxu0 0
      %575 = vmatpush1.bf16.msra.mxu0 0
      %576 = vmatprep.subr.bf16.mxu0 0
      %577 = vmatpush1.bf16.msra.mxu0 0
      %578 = vmatprep.subr.bf16.mxu0 0
      %579 = vmatpush1.bf16.msra.mxu0 0
      %580 = vmatprep.subr.bf16.mxu0 0
      %581 = vmatpush1.bf16.msra.mxu0 0
      %582 = vmatprep.subr.bf16.mxu0 0
      %583 = vmatpush1.bf16.msra.mxu0 0
      %584 = vmatprep.subr.bf16.mxu0 0
      %585 = vmatpush1.bf16.msra.mxu0 0
      %586 = vmatprep.subr.bf16.mxu0 0
      %587 = vmatpush1.bf16.msra.mxu0 0
      %588 = vmatprep.subr.bf16.mxu0 0
      %589 = vmatpush1.bf16.msra.mxu0 0
      %590 = vmatprep.subr.bf16.mxu0 0
      %591 = vmatpush1.bf16.msra.mxu0 0
      %592 = vmatprep.subr.bf16.mxu0 0
      %593 = vmatpush1.bf16.msra.mxu0 0
      %594 = vmatprep.subr.bf16.mxu0 0
      %595 = vmatpush1.bf16.msra.mxu0 0
      %596 = vmatprep.subr.bf16.mxu0 0
      %597 = vmatpush1.bf16.msra.mxu0 0
      %598 = vmatprep.subr.bf16.mxu0 0
      %599 = vmatpush1.bf16.msra.mxu0 0
      %600 = vmatprep.subr.bf16.mxu0 0
      %601 = vmatpush1.bf16.msra.mxu0 0
      %602 = vmatprep.subr.bf16.mxu0 0
      %603 = vmatpush1.bf16.msra.mxu0 0
      %604 = vmatprep.mubr.bf16.mxu0 0
      %605 = vmatmul.mubr.bf16.gmra.mrb[0].mxu0 %v529
      %v606 = vpop.f32.mrb[0].mxu0
      %v607 = vadd.f32 0.0, %v606
      %v608 = vpop.f32.mrb[0].mxu0
      %v609 = vpop.f32.mrb[0].mxu0
      %v610 = vpop.f32.mrb[0].mxu0
      %611 = vdwg.mxu0
      %v612 = vadd.f32 %v469, %v566
      %v613 = vadd.f32 %v471, %v568
      %v614 = vadd.f32 %v510, %v607
      %v615 = vld [vmem:[%s1 + $0xc] sm:$0xf]
      %616 = vrot.lane.b32.xlu0 %v328, 110
      %v617 = vpop.permute.xlu0 %616
      %618 = vrot.lane.b32.xlu0 %v329, 110
      %v619 = vpop.permute.xlu0 %618
      %620 = vrot.lane.b32.xlu0 %v330, 110
      %v621 = vpop.permute.xlu0 %620
      %vm622 = vcmask 900096
      %v623 = vsel %vm622, %v617, %v619
      %v624 = vsel %vm622, %v619, %v621
      %v629 = vsel %vm343, %v615, 0
      %631 = vmatprep.subr.bf16.mxu0 %v624
      %632 = vmatpush1.bf16.msra.mxu0 %v623
      %633 = vmatprep.subr.bf16.mxu0 0
      %634 = vmatpush1.bf16.msra.mxu0 0
      %635 = vmatprep.subr.bf16.mxu0 0
      %636 = vmatpush1.bf16.msra.mxu0 0
      %637 = vmatprep.subr.bf16.mxu0 0
      %638 = vmatpush1.bf16.msra.mxu0 0
      %639 = vmatprep.subr.bf16.mxu0 0
      %640 = vmatpush1.bf16.msra.mxu0 0
      %641 = vmatprep.subr.bf16.mxu0 0
      %642 = vmatpush1.bf16.msra.mxu0 0
      %643 = vmatprep.subr.bf16.mxu0 0
      %644 = vmatpush1.bf16.msra.mxu0 0
      %645 = vmatprep.subr.bf16.mxu0 0
      %646 = vmatpush1.bf16.msra.mxu0 0
      %647 = vmatprep.subr.bf16.mxu0 0
      %648 = vmatpush1.bf16.msra.mxu0 0
      %649 = vmatprep.subr.bf16.mxu0 0
      %650 = vmatpush1.bf16.msra.mxu0 0
      %651 = vmatprep.subr.bf16.mxu0 0
      %652 = vmatpush1.bf16.msra.mxu0 0
      %653 = vmatprep.subr.bf16.mxu0 0
      %654 = vmatpush1.bf16.msra.mxu0 0
      %655 = vmatprep.subr.bf16.mxu0 0
      %656 = vmatpush1.bf16.msra.mxu0 0
      %657 = vmatprep.subr.bf16.mxu0 0
      %658 = vmatpush1.bf16.msra.mxu0 0
      %659 = vmatprep.subr.bf16.mxu0 0
      %660 = vmatpush1.bf16.msra.mxu0 0
      %661 = vmatprep.subr.bf16.mxu0 0
      %662 = vmatpush1.bf16.msra.mxu0 0
      %663 = vmatprep.mubr.bf16.mxu0 0
      %664 = vmatmul.mubr.bf16.gmra.mrb[0].mxu0 %v629
      %v665 = vpop.f32.mrb[0].mxu0
      %v666 = vadd.f32 0.0, %v665
      %v667 = vpop.f32.mrb[0].mxu0
      %v668 = vadd.f32 0.0, %v667
      %v669 = vpop.f32.mrb[0].mxu0
      %v670 = vpop.f32.mrb[0].mxu0
      %671 = vdwg.mxu0
      %672 = vmatprep.subr.bf16.mxu0 0
      %673 = vmatpush1.bf16.msra.mxu0 %v621
      %674 = vmatprep.subr.bf16.mxu0 0
      %675 = vmatpush1.bf16.msra.mxu0 0
      %676 = vmatprep.subr.bf16.mxu0 0
      %677 = vmatpush1.bf16.msra.mxu0 0
      %678 = vmatprep.subr.bf16.mxu0 0
      %679 = vmatpush1.bf16.msra.mxu0 0
      %680 = vmatprep.subr.bf16.mxu0 0
      %681 = vmatpush1.bf16.msra.mxu0 0
      %682 = vmatprep.subr.bf16.mxu0 0
      %683 = vmatpush1.bf16.msra.mxu0 0
      %684 = vmatprep.subr.bf16.mxu0 0
      %685 = vmatpush1.bf16.msra.mxu0 0
      %686 = vmatprep.subr.bf16.mxu0 0
      %687 = vmatpush1.bf16.msra.mxu0 0
      %688 = vmatprep.subr.bf16.mxu0 0
      %689 = vmatpush1.bf16.msra.mxu0 0
      %690 = vmatprep.subr.bf16.mxu0 0
      %691 = vmatpush1.bf16.msra.mxu0 0
      %692 = vmatprep.subr.bf16.mxu0 0
      %693 = vmatpush1.bf16.msra.mxu0 0
      %694 = vmatprep.subr.bf16.mxu0 0
      %695 = vmatpush1.bf16.msra.mxu0 0
      %696 = vmatprep.subr.bf16.mxu0 0
      %697 = vmatpush1.bf16.msra.mxu0 0
      %698 = vmatprep.subr.bf16.mxu0 0
      %699 = vmatpush1.bf16.msra.mxu0 0
      %700 = vmatprep.subr.bf16.mxu0 0
      %701 = vmatpush1.bf16.msra.mxu0 0
      %702 = vmatprep.subr.bf16.mxu0 0
      %703 = vmatpush1.bf16.msra.mxu0 0
      %704 = vmatprep.mubr.bf16.mxu0 0
      %705 = vmatmul.mubr.bf16.gmra.mrb[0].mxu0 %v629
      %v706 = vpop.f32.mrb[0].mxu0
      %v707 = vadd.f32 0.0, %v706
      %v708 = vpop.f32.mrb[0].mxu0
      %v709 = vpop.f32.mrb[0].mxu0
      %v710 = vpop.f32.mrb[0].mxu0
      %711 = vdwg.mxu0
      %v712 = vadd.f32 %v612, %v666
      %v713 = vadd.f32 %v613, %v668
      %v714 = vadd.f32 %v614, %v707
      %v715 = vld [vmem:[%s1 + $0x10] sm:$0xf]
      %716 = vrot.lane.b32.xlu0 %v328, 109
      %v717 = vpop.permute.xlu0 %716
      %718 = vrot.lane.b32.xlu0 %v329, 109
      %v719 = vpop.permute.xlu0 %718
      %720 = vrot.lane.b32.xlu0 %v330, 109
      %v721 = vpop.permute.xlu0 %720
      %vm722 = vcmask 891904
      %v723 = vsel %vm722, %v717, %v719
      %v724 = vsel %vm722, %v719, %v721
      %v729 = vsel %vm343, %v715, 0
      %731 = vmatprep.subr.bf16.mxu0 %v724
      %732 = vmatpush1.bf16.msra.mxu0 %v723
      %733 = vmatprep.subr.bf16.mxu0 0
      %734 = vmatpush1.bf16.msra.mxu0 0
      %735 = vmatprep.subr.bf16.mxu0 0
      %736 = vmatpush1.bf16.msra.mxu0 0
      %737 = vmatprep.subr.bf16.mxu0 0
      %738 = vmatpush1.bf16.msra.mxu0 0
      %739 = vmatprep.subr.bf16.mxu0 0
      %740 = vmatpush1.bf16.msra.mxu0 0
      %741 = vmatprep.subr.bf16.mxu0 0
      %742 = vmatpush1.bf16.msra.mxu0 0
      %743 = vmatprep.subr.bf16.mxu0 0
      %744 = vmatpush1.bf16.msra.mxu0 0
      %745 = vmatprep.subr.bf16.mxu0 0
      %746 = vmatpush1.bf16.msra.mxu0 0
      %747 = vmatprep.subr.bf16.mxu0 0
      %748 = vmatpush1.bf16.msra.mxu0 0
      %749 = vmatprep.subr.bf16.mxu0 0
      %750 = vmatpush1.bf16.msra.mxu0 0
      %751 = vmatprep.subr.bf16.mxu0 0
      %752 = vmatpush1.bf16.msra.mxu0 0
      %753 = vmatprep.subr.bf16.mxu0 0
      %754 = vmatpush1.bf16.msra.mxu0 0
      %755 = vmatprep.subr.bf16.mxu0 0
      %756 = vmatpush1.bf16.msra.mxu0 0
      %757 = vmatprep.subr.bf16.mxu0 0
      %758 = vmatpush1.bf16.msra.mxu0 0
      %759 = vmatprep.subr.bf16.mxu0 0
      %760 = vmatpush1.bf16.msra.mxu0 0
      %761 = vmatprep.subr.bf16.mxu0 0
      %762 = vmatpush1.bf16.msra.mxu0 0
      %763 = vmatprep.mubr.bf16.mxu0 0
      %764 = vmatmul.mubr.bf16.gmra.mrb[0].mxu0 %v729
      %v765 = vpop.f32.mrb[0].mxu0
      %v766 = vadd.f32 0.0, %v765
      %v767 = vpop.f32.mrb[0].mxu0
      %v768 = vadd.f32 0.0, %v767
      %v769 = vpop.f32.mrb[0].mxu0
      %v770 = vpop.f32.mrb[0].mxu0
      %771 = vdwg.mxu0
      %772 = vmatprep.subr.bf16.mxu0 0
      %773 = vmatpush1.bf16.msra.mxu0 %v721
      %774 = vmatprep.subr.bf16.mxu0 0
      %775 = vmatpush1.bf16.msra.mxu0 0
      %776 = vmatprep.subr.bf16.mxu0 0
      %777 = vmatpush1.bf16.msra.mxu0 0
      %778 = vmatprep.subr.bf16.mxu0 0
      %779 = vmatpush1.bf16.msra.mxu0 0
      %780 = vmatprep.subr.bf16.mxu0 0
      %781 = vmatpush1.bf16.msra.mxu0 0
      %782 = vmatprep.subr.bf16.mxu0 0
      %783 = vmatpush1.bf16.msra.mxu0 0
      %784 = vmatprep.subr.bf16.mxu0 0
      %785 = vmatpush1.bf16.msra.mxu0 0
      %786 = vmatprep.subr.bf16.mxu0 0
      %787 = vmatpush1.bf16.msra.mxu0 0
      %788 = vmatprep.subr.bf16.mxu0 0
      %789 = vmatpush1.bf16.msra.mxu0 0
      %790 = vmatprep.subr.bf16.mxu0 0
      %791 = vmatpush1.bf16.msra.mxu0 0
      %792 = vmatprep.subr.bf16.mxu0 0
      %793 = vmatpush1.bf16.msra.mxu0 0
      %794 = vmatprep.subr.bf16.mxu0 0
      %795 = vmatpush1.bf16.msra.mxu0 0
      %796 = vmatprep.subr.bf16.mxu0 0
      %797 = vmatpush1.bf16.msra.mxu0 0
      %798 = vmatprep.subr.bf16.mxu0 0
      %799 = vmatpush1.bf16.msra.mxu0 0
      %800 = vmatprep.subr.bf16.mxu0 0
      %801 = vmatpush1.bf16.msra.mxu0 0
      %802 = vmatprep.subr.bf16.mxu0 0
      %803 = vmatpush1.bf16.msra.mxu0 0
      %804 = vmatprep.mubr.bf16.mxu0 0
      %805 = vmatmul.mubr.bf16.gmra.mrb[0].mxu0 %v729
      %v806 = vpop.f32.mrb[0].mxu0
      %v807 = vadd.f32 0.0, %v806
      %v808 = vpop.f32.mrb[0].mxu0
      %v809 = vpop.f32.mrb[0].mxu0
      %v810 = vpop.f32.mrb[0].mxu0
      %811 = vdwg.mxu0
      %v812 = vadd.f32 %v712, %v766
      %v813 = vadd.f32 %v713, %v768
      %v814 = vadd.f32 %v714, %v807
      %v815 = vld [vmem:[%s1 + $0x14] sm:$0xf]
      %816 = vrot.lane.b32.xlu0 %v328, 108
      %v817 = vpop.permute.xlu0 %816
      %818 = vrot.lane.b32.xlu0 %v329, 108
      %v819 = vpop.permute.xlu0 %818
      %820 = vrot.lane.b32.xlu0 %v330, 108
      %v821 = vpop.permute.xlu0 %820
      %vm822 = vcmask 883712
      %v823 = vsel %vm822, %v817, %v819
      %v824 = vsel %vm822, %v819, %v821
      %v829 = vsel %vm343, %v815, 0
      %831 = vmatprep.subr.bf16.mxu0 %v824
      %832 = vmatpush1.bf16.msra.mxu0 %v823
      %833 = vmatprep.subr.bf16.mxu0 0
      %834 = vmatpush1.bf16.msra.mxu0 0
      %835 = vmatprep.subr.bf16.mxu0 0
      %836 = vmatpush1.bf16.msra.mxu0 0
      %837 = vmatprep.subr.bf16.mxu0 0
      %838 = vmatpush1.bf16.msra.mxu0 0
      %839 = vmatprep.subr.bf16.mxu0 0
      %840 = vmatpush1.bf16.msra.mxu0 0
      %841 = vmatprep.subr.bf16.mxu0 0
      %842 = vmatpush1.bf16.msra.mxu0 0
      %843 = vmatprep.subr.bf16.mxu0 0
      %844 = vmatpush1.bf16.msra.mxu0 0
      %845 = vmatprep.subr.bf16.mxu0 0
      %846 = vmatpush1.bf16.msra.mxu0 0
      %847 = vmatprep.subr.bf16.mxu0 0
      %848 = vmatpush1.bf16.msra.mxu0 0
      %849 = vmatprep.subr.bf16.mxu0 0
      %850 = vmatpush1.bf16.msra.mxu0 0
      %851 = vmatprep.subr.bf16.mxu0 0
      %852 = vmatpush1.bf16.msra.mxu0 0
      %853 = vmatprep.subr.bf16.mxu0 0
      %854 = vmatpush1.bf16.msra.mxu0 0
      %855 = vmatprep.subr.bf16.mxu0 0
      %856 = vmatpush1.bf16.msra.mxu0 0
      %857 = vmatprep.subr.bf16.mxu0 0
      %858 = vmatpush1.bf16.msra.mxu0 0
      %859 = vmatprep.subr.bf16.mxu0 0
      %860 = vmatpush1.bf16.msra.mxu0 0
      %861 = vmatprep.subr.bf16.mxu0 0
      %862 = vmatpush1.bf16.msra.mxu0 0
      %863 = vmatprep.mubr.bf16.mxu0 0
      %864 = vmatmul.mubr.bf16.gmra.mrb[0].mxu0 %v829
      %v865 = vpop.f32.mrb[0].mxu0
      %v866 = vadd.f32 0.0, %v865
      %v867 = vpop.f32.mrb[0].mxu0
      %v868 = vadd.f32 0.0, %v867
      %v869 = vpop.f32.mrb[0].mxu0
      %v870 = vpop.f32.mrb[0].mxu0
      %871 = vdwg.mxu0
      %872 = vmatprep.subr.bf16.mxu0 0
      %873 = vmatpush1.bf16.msra.mxu0 %v821
      %874 = vmatprep.subr.bf16.mxu0 0
      %875 = vmatpush1.bf16.msra.mxu0 0
      %876 = vmatprep.subr.bf16.mxu0 0
      %877 = vmatpush1.bf16.msra.mxu0 0
      %878 = vmatprep.subr.bf16.mxu0 0
      %879 = vmatpush1.bf16.msra.mxu0 0
      %880 = vmatprep.subr.bf16.mxu0 0
      %881 = vmatpush1.bf16.msra.mxu0 0
      %882 = vmatprep.subr.bf16.mxu0 0
      %883 = vmatpush1.bf16.msra.mxu0 0
      %884 = vmatprep.subr.bf16.mxu0 0
      %885 = vmatpush1.bf16.msra.mxu0 0
      %886 = vmatprep.subr.bf16.mxu0 0
      %887 = vmatpush1.bf16.msra.mxu0 0
      %888 = vmatprep.subr.bf16.mxu0 0
      %889 = vmatpush1.bf16.msra.mxu0 0
      %890 = vmatprep.subr.bf16.mxu0 0
      %891 = vmatpush1.bf16.msra.mxu0 0
      %892 = vmatprep.subr.bf16.mxu0 0
      %893 = vmatpush1.bf16.msra.mxu0 0
      %894 = vmatprep.subr.bf16.mxu0 0
      %895 = vmatpush1.bf16.msra.mxu0 0
      %896 = vmatprep.subr.bf16.mxu0 0
      %897 = vmatpush1.bf16.msra.mxu0 0
      %898 = vmatprep.subr.bf16.mxu0 0
      %899 = vmatpush1.bf16.msra.mxu0 0
      %900 = vmatprep.subr.bf16.mxu0 0
      %901 = vmatpush1.bf16.msra.mxu0 0
      %902 = vmatprep.subr.bf16.mxu0 0
      %903 = vmatpush1.bf16.msra.mxu0 0
      %904 = vmatprep.mubr.bf16.mxu0 0
      %905 = vmatmul.mubr.bf16.gmra.mrb[0].mxu0 %v829
      %v906 = vpop.f32.mrb[0].mxu0
      %v907 = vadd.f32 0.0, %v906
      %v908 = vpop.f32.mrb[0].mxu0
      %v909 = vpop.f32.mrb[0].mxu0
      %v910 = vpop.f32.mrb[0].mxu0
      %911 = vdwg.mxu0
      %v912 = vadd.f32 %v812, %v866
      %v913 = vadd.f32 %v813, %v868
      %v914 = vadd.f32 %v814, %v907
      %v915 = vld [vmem:[%s1 + $0x18] sm:$0xf]
      %916 = vrot.lane.b32.xlu0 %v328, 92
      %v917 = vpop.permute.xlu0 %916
      %918 = vrot.lane.b32.xlu0 %v329, 92
      %v919 = vpop.permute.xlu0 %918
      %920 = vrot.lane.b32.xlu0 %v330, 92
      %v921 = vpop.permute.xlu0 %920
      %vm922 = vcmask 752640
      %v923 = vsel %vm922, %v917, %v919
      %v924 = vsel %vm922, %v919, %v921
      %v929 = vsel %vm343, %v915, 0
      %931 = vmatprep.subr.bf16.mxu0 %v924
      %932 = vmatpush1.bf16.msra.mxu0 %v923
      %933 = vmatprep.subr.bf16.mxu0 0
      %934 = vmatpush1.bf16.msra.mxu0 0
      %935 = vmatprep.subr.bf16.mxu0 0
      %936 = vmatpush1.bf16.msra.mxu0 0
      %937 = vmatprep.subr.bf16.mxu0 0
      %938 = vmatpush1.bf16.msra.mxu0 0
      %939 = vmatprep.subr.bf16.mxu0 0
      %940 = vmatpush1.bf16.msra.mxu0 0
      %941 = vmatprep.subr.bf16.mxu0 0
      %942 = vmatpush1.bf16.msra.mxu0 0
      %943 = vmatprep.subr.bf16.mxu0 0
      %944 = vmatpush1.bf16.msra.mxu0 0
      %945 = vmatprep.subr.bf16.mxu0 0
      %946 = vmatpush1.bf16.msra.mxu0 0
      %947 = vmatprep.subr.bf16.mxu0 0
      %948 = vmatpush1.bf16.msra.mxu0 0
      %949 = vmatprep.subr.bf16.mxu0 0
      %950 = vmatpush1.bf16.msra.mxu0 0
      %951 = vmatprep.subr.bf16.mxu0 0
      %952 = vmatpush1.bf16.msra.mxu0 0
      %953 = vmatprep.subr.bf16.mxu0 0
      %954 = vmatpush1.bf16.msra.mxu0 0
      %955 = vmatprep.subr.bf16.mxu0 0
      %956 = vmatpush1.bf16.msra.mxu0 0
      %957 = vmatprep.subr.bf16.mxu0 0
      %958 = vmatpush1.bf16.msra.mxu0 0
      %959 = vmatprep.subr.bf16.mxu0 0
      %960 = vmatpush1.bf16.msra.mxu0 0
      %961 = vmatprep.subr.bf16.mxu0 0
      %962 = vmatpush1.bf16.msra.mxu0 0
      %963 = vmatprep.mubr.bf16.mxu0 0
      %964 = vmatmul.mubr.bf16.gmra.mrb[0].mxu0 %v929
      %v965 = vpop.f32.mrb[0].mxu0
      %v966 = vadd.f32 0.0, %v965
      %v967 = vpop.f32.mrb[0].mxu0
      %v968 = vadd.f32 0.0, %v967
      %v969 = vpop.f32.mrb[0].mxu0
      %v970 = vpop.f32.mrb[0].mxu0
      %971 = vdwg.mxu0
      %972 = vmatprep.subr.bf16.mxu0 0
      %973 = vmatpush1.bf16.msra.mxu0 %v921
      %974 = vmatprep.subr.bf16.mxu0 0
      %975 = vmatpush1.bf16.msra.mxu0 0
      %976 = vmatprep.subr.bf16.mxu0 0
      %977 = vmatpush1.bf16.msra.mxu0 0
      %978 = vmatprep.subr.bf16.mxu0 0
      %979 = vmatpush1.bf16.msra.mxu0 0
      %980 = vmatprep.subr.bf16.mxu0 0
      %981 = vmatpush1.bf16.msra.mxu0 0
      %982 = vmatprep.subr.bf16.mxu0 0
      %983 = vmatpush1.bf16.msra.mxu0 0
      %984 = vmatprep.subr.bf16.mxu0 0
      %985 = vmatpush1.bf16.msra.mxu0 0
      %986 = vmatprep.subr.bf16.mxu0 0
      %987 = vmatpush1.bf16.msra.mxu0 0
      %988 = vmatprep.subr.bf16.mxu0 0
      %989 = vmatpush1.bf16.msra.mxu0 0
      %990 = vmatprep.subr.bf16.mxu0 0
      %991 = vmatpush1.bf16.msra.mxu0 0
      %992 = vmatprep.subr.bf16.mxu0 0
      %993 = vmatpush1.bf16.msra.mxu0 0
      %994 = vmatprep.subr.bf16.mxu0 0
      %995 = vmatpush1.bf16.msra.mxu0 0
      %996 = vmatprep.subr.bf16.mxu0 0
      %997 = vmatpush1.bf16.msra.mxu0 0
      %998 = vmatprep.subr.bf16.mxu0 0
      %999 = vmatpush1.bf16.msra.mxu0 0
      %1000 = vmatprep.subr.bf16.mxu0 0
      %1001 = vmatpush1.bf16.msra.mxu0 0
      %1002 = vmatprep.subr.bf16.mxu0 0
      %1003 = vmatpush1.bf16.msra.mxu0 0
      %1004 = vmatprep.mubr.bf16.mxu0 0
      %1005 = vmatmul.mubr.bf16.gmra.mrb[0].mxu0 %v929
      %v1006 = vpop.f32.mrb[0].mxu0
      %v1007 = vadd.f32 0.0, %v1006
      %v1008 = vpop.f32.mrb[0].mxu0
      %v1009 = vpop.f32.mrb[0].mxu0
      %v1010 = vpop.f32.mrb[0].mxu0
      %1011 = vdwg.mxu0
      %v1012 = vadd.f32 %v912, %v966
      %v1013 = vadd.f32 %v913, %v968
      %v1014 = vadd.f32 %v914, %v1007
      %v1015 = vld [vmem:[%s1 + $0x1c] sm:$0xf]
      %1016 = vrot.lane.b32.xlu0 %v328, 91
      %v1017 = vpop.permute.xlu0 %1016
      %1018 = vrot.lane.b32.xlu0 %v329, 91
      %v1019 = vpop.permute.xlu0 %1018
      %1020 = vrot.lane.b32.xlu0 %v330, 91
      %v1021 = vpop.permute.xlu0 %1020
      %vm1022 = vcmask 744448
      %v1023 = vsel %vm1022, %v1017, %v1019
      %v1024 = vsel %vm1022, %v1019, %v1021
      %v1029 = vsel %vm343, %v1015, 0
      %1031 = vmatprep.subr.bf16.mxu0 %v1024
      %1032 = vmatpush1.bf16.msra.mxu0 %v1023
      %1033 = vmatprep.subr.bf16.mxu0 0
      %1034 = vmatpush1.bf16.msra.mxu0 0
      %1035 = vmatprep.subr.bf16.mxu0 0
      %1036 = vmatpush1.bf16.msra.mxu0 0
      %1037 = vmatprep.subr.bf16.mxu0 0
      %1038 = vmatpush1.bf16.msra.mxu0 0
      %1039 = vmatprep.subr.bf16.mxu0 0
      %1040 = vmatpush1.bf16.msra.mxu0 0
      %1041 = vmatprep.subr.bf16.mxu0 0
      %1042 = vmatpush1.bf16.msra.mxu0 0
      %1043 = vmatprep.subr.bf16.mxu0 0
      %1044 = vmatpush1.bf16.msra.mxu0 0
      %1045 = vmatprep.subr.bf16.mxu0 0
      %1046 = vmatpush1.bf16.msra.mxu0 0
      %1047 = vmatprep.subr.bf16.mxu0 0
      %1048 = vmatpush1.bf16.msra.mxu0 0
      %1049 = vmatprep.subr.bf16.mxu0 0
      %1050 = vmatpush1.bf16.msra.mxu0 0
      %1051 = vmatprep.subr.bf16.mxu0 0
      %1052 = vmatpush1.bf16.msra.mxu0 0
      %1053 = vmatprep.subr.bf16.mxu0 0
      %1054 = vmatpush1.bf16.msra.mxu0 0
      %1055 = vmatprep.subr.bf16.mxu0 0
      %1056 = vmatpush1.bf16.msra.mxu0 0
      %1057 = vmatprep.subr.bf16.mxu0 0
      %1058 = vmatpush1.bf16.msra.mxu0 0
      %1059 = vmatprep.subr.bf16.mxu0 0
      %1060 = vmatpush1.bf16.msra.mxu0 0
      %1061 = vmatprep.subr.bf16.mxu0 0
      %1062 = vmatpush1.bf16.msra.mxu0 0
      %1063 = vmatprep.mubr.bf16.mxu0 0
      %1064 = vmatmul.mubr.bf16.gmra.mrb[0].mxu0 %v1029
      %v1065 = vpop.f32.mrb[0].mxu0
      %v1066 = vadd.f32 0.0, %v1065
      %v1067 = vpop.f32.mrb[0].mxu0
      %v1068 = vadd.f32 0.0, %v1067
      %v1069 = vpop.f32.mrb[0].mxu0
      %v1070 = vpop.f32.mrb[0].mxu0
      %1071 = vdwg.mxu0
      %1072 = vmatprep.subr.bf16.mxu0 0
      %1073 = vmatpush1.bf16.msra.mxu0 %v1021
      %1074 = vmatprep.subr.bf16.mxu0 0
      %1075 = vmatpush1.bf16.msra.mxu0 0
      %1076 = vmatprep.subr.bf16.mxu0 0
      %1077 = vmatpush1.bf16.msra.mxu0 0
      %1078 = vmatprep.subr.bf16.mxu0 0
      %1079 = vmatpush1.bf16.msra.mxu0 0
      %1080 = vmatprep.subr.bf16.mxu0 0
      %1081 = vmatpush1.bf16.msra.mxu0 0
      %1082 = vmatprep.subr.bf16.mxu0 0
      %1083 = vmatpush1.bf16.msra.mxu0 0
      %1084 = vmatprep.subr.bf16.mxu0 0
      %1085 = vmatpush1.bf16.msra.mxu0 0
      %1086 = vmatprep.subr.bf16.mxu0 0
      %1087 = vmatpush1.bf16.msra.mxu0 0
      %1088 = vmatprep.subr.bf16.mxu0 0
      %1089 = vmatpush1.bf16.msra.mxu0 0
      %1090 = vmatprep.subr.bf16.mxu0 0
      %1091 = vmatpush1.bf16.msra.mxu0 0
      %1092 = vmatprep.subr.bf16.mxu0 0
      %1093 = vmatpush1.bf16.msra.mxu0 0
      %1094 = vmatprep.subr.bf16.mxu0 0
      %1095 = vmatpush1.bf16.msra.mxu0 0
      %1096 = vmatprep.subr.bf16.mxu0 0
      %1097 = vmatpush1.bf16.msra.mxu0 0
      %1098 = vmatprep.subr.bf16.mxu0 0
      %1099 = vmatpush1.bf16.msra.mxu0 0
      %1100 = vmatprep.subr.bf16.mxu0 0
      %1101 = vmatpush1.bf16.msra.mxu0 0
      %1102 = vmatprep.subr.bf16.mxu0 0
      %1103 = vmatpush1.bf16.msra.mxu0 0
      %1104 = vmatprep.mubr.bf16.mxu0 0
      %1105 = vmatmul.mubr.bf16.gmra.mrb[0].mxu0 %v1029
      %v1106 = vpop.f32.mrb[0].mxu0
      %v1107 = vadd.f32 0.0, %v1106
      %v1108 = vpop.f32.mrb[0].mxu0
      %v1109 = vpop.f32.mrb[0].mxu0
      %v1110 = vpop.f32.mrb[0].mxu0
      %1111 = vdwg.mxu0
      %v1112 = vadd.f32 %v1012, %v1066
      %v1113 = vadd.f32 %v1013, %v1068
      %v1114 = vadd.f32 %v1014, %v1107
      %v1115 = vld [vmem:[%s1 + $0x20] sm:$0xf]
      %1116 = vrot.lane.b32.xlu0 %v328, 90
      %v1117 = vpop.permute.xlu0 %1116
      %1118 = vrot.lane.b32.xlu0 %v329, 90
      %v1119 = vpop.permute.xlu0 %1118
      %1120 = vrot.lane.b32.xlu0 %v330, 90
      %v1121 = vpop.permute.xlu0 %1120
      %vm1122 = vcmask 736256
      %v1123 = vsel %vm1122, %v1117, %v1119
      %v1124 = vsel %vm1122, %v1119, %v1121
      %v1129 = vsel %vm343, %v1115, 0
      %1131 = vmatprep.subr.bf16.mxu0 %v1124
      %1132 = vmatpush1.bf16.msra.mxu0 %v1123
      %1133 = vmatprep.subr.bf16.mxu0 0
      %1134 = vmatpush1.bf16.msra.mxu0 0
      %1135 = vmatprep.subr.bf16.mxu0 0
      %1136 = vmatpush1.bf16.msra.mxu0 0
      %1137 = vmatprep.subr.bf16.mxu0 0
      %1138 = vmatpush1.bf16.msra.mxu0 0
      %1139 = vmatprep.subr.bf16.mxu0 0
      %1140 = vmatpush1.bf16.msra.mxu0 0
      %1141 = vmatprep.subr.bf16.mxu0 0
      %1142 = vmatpush1.bf16.msra.mxu0 0
      %1143 = vmatprep.subr.bf16.mxu0 0
      %1144 = vmatpush1.bf16.msra.mxu0 0
      %1145 = vmatprep.subr.bf16.mxu0 0
      %1146 = vmatpush1.bf16.msra.mxu0 0
      %1147 = vmatprep.subr.bf16.mxu0 0
      %1148 = vmatpush1.bf16.msra.mxu0 0
      %1149 = vmatprep.subr.bf16.mxu0 0
      %1150 = vmatpush1.bf16.msra.mxu0 0
      %1151 = vmatprep.subr.bf16.mxu0 0
      %1152 = vmatpush1.bf16.msra.mxu0 0
      %1153 = vmatprep.subr.bf16.mxu0 0
      %1154 = vmatpush1.bf16.msra.mxu0 0
      %1155 = vmatprep.subr.bf16.mxu0 0
      %1156 = vmatpush1.bf16.msra.mxu0 0
      %1157 = vmatprep.subr.bf16.mxu0 0
      %1158 = vmatpush1.bf16.msra.mxu0 0
      %1159 = vmatprep.subr.bf16.mxu0 0
      %1160 = vmatpush1.bf16.msra.mxu0 0
      %1161 = vmatprep.subr.bf16.mxu0 0
      %1162 = vmatpush1.bf16.msra.mxu0 0
      %1163 = vmatprep.mubr.bf16.mxu0 0
      %1164 = vmatmul.mubr.bf16.gmra.mrb[0].mxu0 %v1129
      %v1165 = vpop.f32.mrb[0].mxu0
      %v1166 = vadd.f32 0.0, %v1165
      %v1167 = vpop.f32.mrb[0].mxu0
      %v1168 = vadd.f32 0.0, %v1167
      %v1169 = vpop.f32.mrb[0].mxu0
      %v1170 = vpop.f32.mrb[0].mxu0
      %1171 = vdwg.mxu0
      %1172 = vmatprep.subr.bf16.mxu0 0
      %1173 = vmatpush1.bf16.msra.mxu0 %v1121
      %1174 = vmatprep.subr.bf16.mxu0 0
      %1175 = vmatpush1.bf16.msra.mxu0 0
      %1176 = vmatprep.subr.bf16.mxu0 0
      %1177 = vmatpush1.bf16.msra.mxu0 0
      %1178 = vmatprep.subr.bf16.mxu0 0
      %1179 = vmatpush1.bf16.msra.mxu0 0
      %1180 = vmatprep.subr.bf16.mxu0 0
      %1181 = vmatpush1.bf16.msra.mxu0 0
      %1182 = vmatprep.subr.bf16.mxu0 0
      %1183 = vmatpush1.bf16.msra.mxu0 0
      %1184 = vmatprep.subr.bf16.mxu0 0
      %1185 = vmatpush1.bf16.msra.mxu0 0
      %1186 = vmatprep.subr.bf16.mxu0 0
      %1187 = vmatpush1.bf16.msra.mxu0 0
      %1188 = vmatprep.subr.bf16.mxu0 0
      %1189 = vmatpush1.bf16.msra.mxu0 0
      %1190 = vmatprep.subr.bf16.mxu0 0
      %1191 = vmatpush1.bf16.msra.mxu0 0
      %1192 = vmatprep.subr.bf16.mxu0 0
      %1193 = vmatpush1.bf16.msra.mxu0 0
      %1194 = vmatprep.subr.bf16.mxu0 0
      %1195 = vmatpush1.bf16.msra.mxu0 0
      %1196 = vmatprep.subr.bf16.mxu0 0
      %1197 = vmatpush1.bf16.msra.mxu0 0
      %1198 = vmatprep.subr.bf16.mxu0 0
      %1199 = vmatpush1.bf16.msra.mxu0 0
      %1200 = vmatprep.subr.bf16.mxu0 0
      %1201 = vmatpush1.bf16.msra.mxu0 0
      %1202 = vmatprep.subr.bf16.mxu0 0
      %1203 = vmatpush1.bf16.msra.mxu0 0
      %1204 = vmatprep.mubr.bf16.mxu0 0
      %1205 = vmatmul.mubr.bf16.gmra.mrb[0].mxu0 %v1129
      %v1206 = vpop.f32.mrb[0].mxu0
      %v1207 = vadd.f32 0.0, %v1206
      %v1208 = vpop.f32.mrb[0].mxu0
      %v1209 = vpop.f32.mrb[0].mxu0
      %v1210 = vpop.f32.mrb[0].mxu0
      %1211 = vdwg.mxu0
      %v1212 = vadd.f32 %v1112, %v1166
      %v1213 = vadd.f32 %v1113, %v1168
      %v1214 = vadd.f32 %v1114, %v1207
      %v1215 = vld [vmem:[%s2] sm:$0xff]
      %1217 = vset.pattern.permute.xlu0 0
      %1218 = vperm.xlu0 %1217, %v1215
      %v1219 = vpop.permute.xlu0 %1218
      %v1221 = vadd.f32 %v1212, %v1219
      %v1222 = vadd.f32 %v1213, %v1219
      %v1223 = vadd.f32 %v1214, %v1219
      %v1224 = vxor.u32 %v1221, 2147483648
      %v1225 = vxor.u32 %v1222, 2147483648
      %v1226 = vxor.u32 %v1223, 2147483648
      %v1227 = vmul.f32 %v1224, 1.442695
      %v1228 = vpow.pop %v1227
      %v1229 = vmul.f32 %v1225, 1.442695
      %v1230 = vpow.pop %v1229
      %v1231 = vmul.f32 %v1226, 1.442695
      %v1232 = vpow.pop %v1231
      %v1233 = vadd.f32 %v1228, 1.0
      %v1234 = vadd.f32 %v1230, 1.0
      %v1235 = vadd.f32 %v1232, 1.0
      %v1236 = vrcp.pop %v1233
      %v1237 = vmul.f32 1.0, %v1236
      %v1238 = vrcp.pop %v1234
      %v1239 = vmul.f32 1.0, %v1238
      %v1240 = vrcp.pop %v1235
      %v1241 = vmul.f32 1.0, %v1240
      %v1242 = vmul.f32 %v1221, %v1237
      %v1243 = vmul.f32 %v1222, %v1239
      %v1244 = vmul.f32 %v1223, %v1241
      %v1246 = vlaneseq
      %v1247 = vshrl.u32 %v1246, 7
      %v1248 = vsub.s32 0, %v1247
      %v1249 = vrot.slane %v307, %v1248
      %v1250 = vlaneseq
      %v1251 = vshrl.u32 %v1250, 7
      %v1252 = vsub.s32 1, %v1251
      %v1253 = vrot.slane %v307, %v1252
      %v1254 = vlaneseq
      %v1255 = vshrl.u32 %v1254, 7
      %v1256 = vsub.s32 2, %v1255
      %v1257 = vrot.slane %v307, %v1256
      %v1261 = vmul.f32 %v1242, %v1249
      %v1262 = vmul.f32 %v1243, %v1253
      %v1263 = vmul.f32 %v1244, %v1257
      %v1264 = vpack.c.bf16 %v1261, %v1261
      %v1265 = vpack.c.bf16 %v1262, %v1262
      %v1266 = vpack.c.bf16 %v1263, %v1263
      %v1270 = vunpack.c.l.b16 %v1264
      %v1271 = vunpack.c.l.b16 %v1265
      %v1272 = vunpack.c.l.b16 %v1266
      %v1273 = vpack.c.b16 %v1271, %v1270
      %v1274 = vpack.c.b16 %v1272, %v1272
      %1275 = vrot.lane.b32.xlu0 %v1273, 19
      %v1276 = vpop.permute.xlu0 %1275
      %1277 = vrot.lane.b32.xlu0 %v1274, 19
      %v1278 = vpop.permute.xlu0 %1277
      %v1279 = vrot.slane %v1276, 4
      %vm1280 = vcmask 154624
      %v1281 = vsel %vm1280, %v1279, %v1276
      %v1282 = vsel %vm1280, %v1279, %v1278
      %vm1285 = vcmask 1043608
      %vm1286 = vcmask 1047556
      %vm1287 = vmor %vm1286, %vm1285
      %1288 = vst.msk [vmem:[#allocation2] sm:$0xff] %vm1287, %v1281
      %vm1289 = vcmask 412672
      %1290 = vst.msk [vmem:[#allocation2 + $0x8] sm:$0xf] %vm1289, %v1282
      %v1291 = vld [vmem:[%s3] sm:$0xf]
      %v1292 = vld [vmem:[#allocation2] sm:$0xff]
      %v1293 = vld [vmem:[#allocation2 + $0x8] sm:$0xf]
      %v1294 = vld [vmem:[%s3 + $0x4] sm:$0xf]
      %v1297 = vunpack.c.l.b16 %v1292
      %v1298 = vunpack.c.h.b16 %v1292
      %v1299 = vunpack.c.l.b16 %v1293
      %v1300 = vpack.c.b16 %v1297, %v1297
      %v1301 = vpack.c.b16 %v1298, %v1298
      %v1302 = vpack.c.b16 %v1299, %v1299
      %1303 = vrot.lane.b32.xlu0 %v1300, 127
      %v1304 = vpop.permute.xlu0 %1303
      %1305 = vrot.lane.b32.xlu0 %v1301, 127
      %v1306 = vpop.permute.xlu0 %1305
      %1307 = vrot.lane.b32.xlu0 %v1302, 127
      %v1308 = vpop.permute.xlu0 %1307
      %v1309 = vsel %vm337, %v1304, %v1306
      %v1310 = vsel %vm337, %v1306, %v1308
      %vm1311 = vcmask 64512
      %v1313 = vsel %vm1311, %v1294, 0
      %vm1315 = vcmask 1043456
      %v1317 = vsel %vm1315, %v1309, 0
      %v1320 = vsel %vm1315, %v1310, 0
      %v1323 = vsel %vm1315, %v1308, 0
      %1325 = vmatprep.subr.bf16.mxu0 %v1320
      %1326 = vmatpush1.bf16.msra.mxu0 %v1317
      %1327 = vmatprep.subr.bf16.mxu0 0
      %1328 = vmatpush1.bf16.msra.mxu0 0
      %1329 = vmatprep.subr.bf16.mxu0 0
      %1330 = vmatpush1.bf16.msra.mxu0 0
      %1331 = vmatprep.subr.bf16.mxu0 0
      %1332 = vmatpush1.bf16.msra.mxu0 0
      %1333 = vmatprep.subr.bf16.mxu0 0
      %1334 = vmatpush1.bf16.msra.mxu0 0
      %1335 = vmatprep.subr.bf16.mxu0 0
      %1336 = vmatpush1.bf16.msra.mxu0 0
      %1337 = vmatprep.subr.bf16.mxu0 0
      %1338 = vmatpush1.bf16.msra.mxu0 0
      %1339 = vmatprep.subr.bf16.mxu0 0
      %1340 = vmatpush1.bf16.msra.mxu0 0
      %1341 = vmatprep.subr.bf16.mxu0 0
      %1342 = vmatpush1.bf16.msra.mxu0 0
      %1343 = vmatprep.subr.bf16.mxu0 0
      %1344 = vmatpush1.bf16.msra.mxu0 0
      %1345 = vmatprep.subr.bf16.mxu0 0
      %1346 = vmatpush1.bf16.msra.mxu0 0
      %1347 = vmatprep.subr.bf16.mxu0 0
      %1348 = vmatpush1.bf16.msra.mxu0 0
      %1349 = vmatprep.subr.bf16.mxu0 0
      %1350 = vmatpush1.bf16.msra.mxu0 0
      %1351 = vmatprep.subr.bf16.mxu0 0
      %1352 = vmatpush1.bf16.msra.mxu0 0
      %1353 = vmatprep.subr.bf16.mxu0 0
      %1354 = vmatpush1.bf16.msra.mxu0 0
      %1355 = vmatprep.subr.bf16.mxu0 0
      %1356 = vmatpush1.bf16.msra.mxu0 0
      %1357 = vmatprep.mubr.bf16.mxu0 0
      %1358 = vmatmul.mubr.bf16.gmra.mrb[0].mxu0 %v1313
      %v1359 = vpop.f32.mrb[0].mxu0
      %v1360 = vadd.f32 0.0, %v1359
      %v1361 = vpop.f32.mrb[0].mxu0
      %v1362 = vadd.f32 0.0, %v1361
      %v1363 = vpop.f32.mrb[0].mxu0
      %v1364 = vpop.f32.mrb[0].mxu0
      %1365 = vdwg.mxu0
      %1366 = vmatprep.subr.bf16.mxu0 0
      %1367 = vmatpush1.bf16.msra.mxu0 %v1323
      %1368 = vmatprep.subr.bf16.mxu0 0
      %1369 = vmatpush1.bf16.msra.mxu0 0
      %1370 = vmatprep.subr.bf16.mxu0 0
      %1371 = vmatpush1.bf16.msra.mxu0 0
      %1372 = vmatprep.subr.bf16.mxu0 0
      %1373 = vmatpush1.bf16.msra.mxu0 0
      %1374 = vmatprep.subr.bf16.mxu0 0
      %1375 = vmatpush1.bf16.msra.mxu0 0
      %1376 = vmatprep.subr.bf16.mxu0 0
      %1377 = vmatpush1.bf16.msra.mxu0 0
      %1378 = vmatprep.subr.bf16.mxu0 0
      %1379 = vmatpush1.bf16.msra.mxu0 0
      %1380 = vmatprep.subr.bf16.mxu0 0
      %1381 = vmatpush1.bf16.msra.mxu0 0
      %1382 = vmatprep.subr.bf16.mxu0 0
      %1383 = vmatpush1.bf16.msra.mxu0 0
      %1384 = vmatprep.subr.bf16.mxu0 0
      %1385 = vmatpush1.bf16.msra.mxu0 0
      %1386 = vmatprep.subr.bf16.mxu0 0
      %1387 = vmatpush1.bf16.msra.mxu0 0
      %1388 = vmatprep.subr.bf16.mxu0 0
      %1389 = vmatpush1.bf16.msra.mxu0 0
      %1390 = vmatprep.subr.bf16.mxu0 0
      %1391 = vmatpush1.bf16.msra.mxu0 0
      %1392 = vmatprep.subr.bf16.mxu0 0
      %1393 = vmatpush1.bf16.msra.mxu0 0
      %1394 = vmatprep.subr.bf16.mxu0 0
      %1395 = vmatpush1.bf16.msra.mxu0 0
      %1396 = vmatprep.subr.bf16.mxu0 0
      %1397 = vmatpush1.bf16.msra.mxu0 0
      %1398 = vmatprep.mubr.bf16.mxu0 0
      %1399 = vmatmul.mubr.bf16.gmra.mrb[0].mxu0 %v1313
      %v1400 = vpop.f32.mrb[0].mxu0
      %v1401 = vadd.f32 0.0, %v1400
      %v1402 = vpop.f32.mrb[0].mxu0
      %v1403 = vpop.f32.mrb[0].mxu0
      %v1404 = vpop.f32.mrb[0].mxu0
      %1405 = vdwg.mxu0
      %v1407 = vsel %vm1311, %v1291, 0
      %v1410 = vsel %vm1315, %v1300, 0
      %v1413 = vsel %vm1315, %v1301, 0
      %v1416 = vsel %vm1315, %v1302, 0
      %1418 = vmatprep.subr.bf16.mxu0 %v1413
      %1419 = vmatpush1.bf16.msra.mxu0 %v1410
      %1420 = vmatprep.subr.bf16.mxu0 0
      %1421 = vmatpush1.bf16.msra.mxu0 0
      %1422 = vmatprep.subr.bf16.mxu0 0
      %1423 = vmatpush1.bf16.msra.mxu0 0
      %1424 = vmatprep.subr.bf16.mxu0 0
      %1425 = vmatpush1.bf16.msra.mxu0 0
      %1426 = vmatprep.subr.bf16.mxu0 0
      %1427 = vmatpush1.bf16.msra.mxu0 0
      %1428 = vmatprep.subr.bf16.mxu0 0
      %1429 = vmatpush1.bf16.msra.mxu0 0
      %1430 = vmatprep.subr.bf16.mxu0 0
      %1431 = vmatpush1.bf16.msra.mxu0 0
      %1432 = vmatprep.subr.bf16.mxu0 0
      %1433 = vmatpush1.bf16.msra.mxu0 0
      %1434 = vmatprep.subr.bf16.mxu0 0
      %1435 = vmatpush1.bf16.msra.mxu0 0
      %1436 = vmatprep.subr.bf16.mxu0 0
      %1437 = vmatpush1.bf16.msra.mxu0 0
      %1438 = vmatprep.subr.bf16.mxu0 0
      %1439 = vmatpush1.bf16.msra.mxu0 0
      %1440 = vmatprep.subr.bf16.mxu0 0
      %1441 = vmatpush1.bf16.msra.mxu0 0
      %1442 = vmatprep.subr.bf16.mxu0 0
      %1443 = vmatpush1.bf16.msra.mxu0 0
      %1444 = vmatprep.subr.bf16.mxu0 0
      %1445 = vmatpush1.bf16.msra.mxu0 0
      %1446 = vmatprep.subr.bf16.mxu0 0
      %1447 = vmatpush1.bf16.msra.mxu0 0
      %1448 = vmatprep.subr.bf16.mxu0 0
      %1449 = vmatpush1.bf16.msra.mxu0 0
      %1450 = vmatprep.mubr.bf16.mxu0 0
      %1451 = vmatmul.mubr.bf16.gmra.mrb[0].mxu0 %v1407
      %v1452 = vpop.f32.mrb[0].mxu0
      %v1453 = vadd.f32 %v1360, %v1452
      %v1454 = vpop.f32.mrb[0].mxu0
      %v1455 = vadd.f32 %v1362, %v1454
      %v1456 = vpop.f32.mrb[0].mxu0
      %v1457 = vpop.f32.mrb[0].mxu0
      %1458 = vdwg.mxu0
      %1459 = vmatprep.subr.bf16.mxu0 0
      %1460 = vmatpush1.bf16.msra.mxu0 %v1416
      %1461 = vmatprep.subr.bf16.mxu0 0
      %1462 = vmatpush1.bf16.msra.mxu0 0
      %1463 = vmatprep.subr.bf16.mxu0 0
      %1464 = vmatpush1.bf16.msra.mxu0 0
      %1465 = vmatprep.subr.bf16.mxu0 0
      %1466 = vmatpush1.bf16.msra.mxu0 0
      %1467 = vmatprep.subr.bf16.mxu0 0
      %1468 = vmatpush1.bf16.msra.mxu0 0
      %1469 = vmatprep.subr.bf16.mxu0 0
      %1470 = vmatpush1.bf16.msra.mxu0 0
      %1471 = vmatprep.subr.bf16.mxu0 0
      %1472 = vmatpush1.bf16.msra.mxu0 0
      %1473 = vmatprep.subr.bf16.mxu0 0
      %1474 = vmatpush1.bf16.msra.mxu0 0
      %1475 = vmatprep.subr.bf16.mxu0 0
      %1476 = vmatpush1.bf16.msra.mxu0 0
      %1477 = vmatprep.subr.bf16.mxu0 0
      %1478 = vmatpush1.bf16.msra.mxu0 0
      %1479 = vmatprep.subr.bf16.mxu0 0
      %1480 = vmatpush1.bf16.msra.mxu0 0
      %1481 = vmatprep.subr.bf16.mxu0 0
      %1482 = vmatpush1.bf16.msra.mxu0 0
      %1483 = vmatprep.subr.bf16.mxu0 0
      %1484 = vmatpush1.bf16.msra.mxu0 0
      %1485 = vmatprep.subr.bf16.mxu0 0
      %1486 = vmatpush1.bf16.msra.mxu0 0
      %1487 = vmatprep.subr.bf16.mxu0 0
      %1488 = vmatpush1.bf16.msra.mxu0 0
      %1489 = vmatprep.subr.bf16.mxu0 0
      %1490 = vmatpush1.bf16.msra.mxu0 0
      %1491 = vmatprep.mubr.bf16.mxu0 0
      %1492 = vmatmul.mubr.bf16.gmra.mrb[0].mxu0 %v1407
      %v1493 = vpop.f32.mrb[0].mxu0
      %v1494 = vadd.f32 %v1401, %v1493
      %v1495 = vpop.f32.mrb[0].mxu0
      %v1496 = vpop.f32.mrb[0].mxu0
      %v1497 = vpop.f32.mrb[0].mxu0
      %1498 = vdwg.mxu0
      %v1499 = vld [vmem:[%s3 + $0x8] sm:$0xf]
      %1500 = vrot.lane.b32.xlu0 %v1300, 126
      %v1501 = vpop.permute.xlu0 %1500
      %1502 = vrot.lane.b32.xlu0 %v1301, 126
      %v1503 = vpop.permute.xlu0 %1502
      %1504 = vrot.lane.b32.xlu0 %v1302, 126
      %v1505 = vpop.permute.xlu0 %1504
      %v1506 = vsel %vm522, %v1501, %v1503
      %v1507 = vsel %vm522, %v1503, %v1505
      %v1509 = vsel %vm1311, %v1499, 0
      %v1512 = vsel %vm1315, %v1506, 0
      %v1515 = vsel %vm1315, %v1507, 0
      %v1518 = vsel %vm1315, %v1505, 0
      %1520 = vmatprep.subr.bf16.mxu0 %v1515
      %1521 = vmatpush1.bf16.msra.mxu0 %v1512
      %1522 = vmatprep.subr.bf16.mxu0 0
      %1523 = vmatpush1.bf16.msra.mxu0 0
      %1524 = vmatprep.subr.bf16.mxu0 0
      %1525 = vmatpush1.bf16.msra.mxu0 0
      %1526 = vmatprep.subr.bf16.mxu0 0
      %1527 = vmatpush1.bf16.msra.mxu0 0
      %1528 = vmatprep.subr.bf16.mxu0 0
      %1529 = vmatpush1.bf16.msra.mxu0 0
      %1530 = vmatprep.subr.bf16.mxu0 0
      %1531 = vmatpush1.bf16.msra.mxu0 0
      %1532 = vmatprep.subr.bf16.mxu0 0
      %1533 = vmatpush1.bf16.msra.mxu0 0
      %1534 = vmatprep.subr.bf16.mxu0 0
      %1535 = vmatpush1.bf16.msra.mxu0 0
      %1536 = vmatprep.subr.bf16.mxu0 0
      %1537 = vmatpush1.bf16.msra.mxu0 0
      %1538 = vmatprep.subr.bf16.mxu0 0
      %1539 = vmatpush1.bf16.msra.mxu0 0
      %1540 = vmatprep.subr.bf16.mxu0 0
      %1541 = vmatpush1.bf16.msra.mxu0 0
      %1542 = vmatprep.subr.bf16.mxu0 0
      %1543 = vmatpush1.bf16.msra.mxu0 0
      %1544 = vmatprep.subr.bf16.mxu0 0
      %1545 = vmatpush1.bf16.msra.mxu0 0
      %1546 = vmatprep.subr.bf16.mxu0 0
      %1547 = vmatpush1.bf16.msra.mxu0 0
      %1548 = vmatprep.subr.bf16.mxu0 0
      %1549 = vmatpush1.bf16.msra.mxu0 0
      %1550 = vmatprep.subr.bf16.mxu0 0
      %1551 = vmatpush1.bf16.msra.mxu0 0
      %1552 = vmatprep.mubr.bf16.mxu0 0
      %1553 = vmatmul.mubr.bf16.gmra.mrb[0].mxu0 %v1509
      %v1554 = vpop.f32.mrb[0].mxu0
      %v1555 = vadd.f32 0.0, %v1554
      %v1556 = vpop.f32.mrb[0].mxu0
      %v1557 = vadd.f32 0.0, %v1556
      %v1558 = vpop.f32.mrb[0].mxu0
      %v1559 = vpop.f32.mrb[0].mxu0
      %1560 = vdwg.mxu0
      %1561 = vmatprep.subr.bf16.mxu0 0
      %1562 = vmatpush1.bf16.msra.mxu0 %v1518
      %1563 = vmatprep.subr.bf16.mxu0 0
      %1564 = vmatpush1.bf16.msra.mxu0 0
      %1565 = vmatprep.subr.bf16.mxu0 0
      %1566 = vmatpush1.bf16.msra.mxu0 0
      %1567 = vmatprep.subr.bf16.mxu0 0
      %1568 = vmatpush1.bf16.msra.mxu0 0
      %1569 = vmatprep.subr.bf16.mxu0 0
      %1570 = vmatpush1.bf16.msra.mxu0 0
      %1571 = vmatprep.subr.bf16.mxu0 0
      %1572 = vmatpush1.bf16.msra.mxu0 0
      %1573 = vmatprep.subr.bf16.mxu0 0
      %1574 = vmatpush1.bf16.msra.mxu0 0
      %1575 = vmatprep.subr.bf16.mxu0 0
      %1576 = vmatpush1.bf16.msra.mxu0 0
      %1577 = vmatprep.subr.bf16.mxu0 0
      %1578 = vmatpush1.bf16.msra.mxu0 0
      %1579 = vmatprep.subr.bf16.mxu0 0
      %1580 = vmatpush1.bf16.msra.mxu0 0
      %1581 = vmatprep.subr.bf16.mxu0 0
      %1582 = vmatpush1.bf16.msra.mxu0 0
      %1583 = vmatprep.subr.bf16.mxu0 0
      %1584 = vmatpush1.bf16.msra.mxu0 0
      %1585 = vmatprep.subr.bf16.mxu0 0
      %1586 = vmatpush1.bf16.msra.mxu0 0
      %1587 = vmatprep.subr.bf16.mxu0 0
      %1588 = vmatpush1.bf16.msra.mxu0 0
      %1589 = vmatprep.subr.bf16.mxu0 0
      %1590 = vmatpush1.bf16.msra.mxu0 0
      %1591 = vmatprep.subr.bf16.mxu0 0
      %1592 = vmatpush1.bf16.msra.mxu0 0
      %1593 = vmatprep.mubr.bf16.mxu0 0
      %1594 = vmatmul.mubr.bf16.gmra.mrb[0].mxu0 %v1509
      %v1595 = vpop.f32.mrb[0].mxu0
      %v1596 = vadd.f32 0.0, %v1595
      %v1597 = vpop.f32.mrb[0].mxu0
      %v1598 = vpop.f32.mrb[0].mxu0
      %v1599 = vpop.f32.mrb[0].mxu0
      %1600 = vdwg.mxu0
      %v1601 = vadd.f32 %v1453, %v1555
      %v1602 = vadd.f32 %v1455, %v1557
      %v1603 = vadd.f32 %v1494, %v1596
      %v1604 = vld [vmem:[%s3 + $0xc] sm:$0xf]
      %1605 = vrot.lane.b32.xlu0 %v1300, 110
      %v1606 = vpop.permute.xlu0 %1605
      %1607 = vrot.lane.b32.xlu0 %v1301, 110
      %v1608 = vpop.permute.xlu0 %1607
      %1609 = vrot.lane.b32.xlu0 %v1302, 110
      %v1610 = vpop.permute.xlu0 %1609
      %v1611 = vsel %vm622, %v1606, %v1608
      %v1612 = vsel %vm622, %v1608, %v1610
      %v1614 = vsel %vm1311, %v1604, 0
      %v1617 = vsel %vm1315, %v1611, 0
      %v1620 = vsel %vm1315, %v1612, 0
      %v1623 = vsel %vm1315, %v1610, 0
      %1625 = vmatprep.subr.bf16.mxu0 %v1620
      %1626 = vmatpush1.bf16.msra.mxu0 %v1617
      %1627 = vmatprep.subr.bf16.mxu0 0
      %1628 = vmatpush1.bf16.msra.mxu0 0
      %1629 = vmatprep.subr.bf16.mxu0 0
      %1630 = vmatpush1.bf16.msra.mxu0 0
      %1631 = vmatprep.subr.bf16.mxu0 0
      %1632 = vmatpush1.bf16.msra.mxu0 0
      %1633 = vmatprep.subr.bf16.mxu0 0
      %1634 = vmatpush1.bf16.msra.mxu0 0
      %1635 = vmatprep.subr.bf16.mxu0 0
      %1636 = vmatpush1.bf16.msra.mxu0 0
      %1637 = vmatprep.subr.bf16.mxu0 0
      %1638 = vmatpush1.bf16.msra.mxu0 0
      %1639 = vmatprep.subr.bf16.mxu0 0
      %1640 = vmatpush1.bf16.msra.mxu0 0
      %1641 = vmatprep.subr.bf16.mxu0 0
      %1642 = vmatpush1.bf16.msra.mxu0 0
      %1643 = vmatprep.subr.bf16.mxu0 0
      %1644 = vmatpush1.bf16.msra.mxu0 0
      %1645 = vmatprep.subr.bf16.mxu0 0
      %1646 = vmatpush1.bf16.msra.mxu0 0
      %1647 = vmatprep.subr.bf16.mxu0 0
      %1648 = vmatpush1.bf16.msra.mxu0 0
      %1649 = vmatprep.subr.bf16.mxu0 0
      %1650 = vmatpush1.bf16.msra.mxu0 0
      %1651 = vmatprep.subr.bf16.mxu0 0
      %1652 = vmatpush1.bf16.msra.mxu0 0
      %1653 = vmatprep.subr.bf16.mxu0 0
      %1654 = vmatpush1.bf16.msra.mxu0 0
      %1655 = vmatprep.subr.bf16.mxu0 0
      %1656 = vmatpush1.bf16.msra.mxu0 0
      %1657 = vmatprep.mubr.bf16.mxu0 0
      %1658 = vmatmul.mubr.bf16.gmra.mrb[0].mxu0 %v1614
      %v1659 = vpop.f32.mrb[0].mxu0
      %v1660 = vadd.f32 0.0, %v1659
      %v1661 = vpop.f32.mrb[0].mxu0
      %v1662 = vadd.f32 0.0, %v1661
      %v1663 = vpop.f32.mrb[0].mxu0
      %v1664 = vpop.f32.mrb[0].mxu0
      %1665 = vdwg.mxu0
      %1666 = vmatprep.subr.bf16.mxu0 0
      %1667 = vmatpush1.bf16.msra.mxu0 %v1623
      %1668 = vmatprep.subr.bf16.mxu0 0
      %1669 = vmatpush1.bf16.msra.mxu0 0
      %1670 = vmatprep.subr.bf16.mxu0 0
      %1671 = vmatpush1.bf16.msra.mxu0 0
      %1672 = vmatprep.subr.bf16.mxu0 0
      %1673 = vmatpush1.bf16.msra.mxu0 0
      %1674 = vmatprep.subr.bf16.mxu0 0
      %1675 = vmatpush1.bf16.msra.mxu0 0
      %1676 = vmatprep.subr.bf16.mxu0 0
      %1677 = vmatpush1.bf16.msra.mxu0 0
      %1678 = vmatprep.subr.bf16.mxu0 0
      %1679 = vmatpush1.bf16.msra.mxu0 0
      %1680 = vmatprep.subr.bf16.mxu0 0
      %1681 = vmatpush1.bf16.msra.mxu0 0
      %1682 = vmatprep.subr.bf16.mxu0 0
      %1683 = vmatpush1.bf16.msra.mxu0 0
      %1684 = vmatprep.subr.bf16.mxu0 0
      %1685 = vmatpush1.bf16.msra.mxu0 0
      %1686 = vmatprep.subr.bf16.mxu0 0
      %1687 = vmatpush1.bf16.msra.mxu0 0
      %1688 = vmatprep.subr.bf16.mxu0 0
      %1689 = vmatpush1.bf16.msra.mxu0 0
      %1690 = vmatprep.subr.bf16.mxu0 0
      %1691 = vmatpush1.bf16.msra.mxu0 0
      %1692 = vmatprep.subr.bf16.mxu0 0
      %1693 = vmatpush1.bf16.msra.mxu0 0
      %1694 = vmatprep.subr.bf16.mxu0 0
      %1695 = vmatpush1.bf16.msra.mxu0 0
      %1696 = vmatprep.subr.bf16.mxu0 0
      %1697 = vmatpush1.bf16.msra.mxu0 0
      %1698 = vmatprep.mubr.bf16.mxu0 0
      %1699 = vmatmul.mubr.bf16.gmra.mrb[0].mxu0 %v1614
      %v1700 = vpop.f32.mrb[0].mxu0
      %v1701 = vadd.f32 0.0, %v1700
      %v1702 = vpop.f32.mrb[0].mxu0
      %v1703 = vpop.f32.mrb[0].mxu0
      %v1704 = vpop.f32.mrb[0].mxu0
      %1705 = vdwg.mxu0
      %v1706 = vadd.f32 %v1601, %v1660
      %v1707 = vadd.f32 %v1602, %v1662
      %v1708 = vadd.f32 %v1603, %v1701
      %v1709 = vld [vmem:[%s3 + $0x10] sm:$0xf]
      %1710 = vrot.lane.b32.xlu0 %v1300, 109
      %v1711 = vpop.permute.xlu0 %1710
      %1712 = vrot.lane.b32.xlu0 %v1301, 109
      %v1713 = vpop.permute.xlu0 %1712
      %1714 = vrot.lane.b32.xlu0 %v1302, 109
      %v1715 = vpop.permute.xlu0 %1714
      %v1716 = vsel %vm722, %v1711, %v1713
      %v1717 = vsel %vm722, %v1713, %v1715
      %v1719 = vsel %vm1311, %v1709, 0
      %v1722 = vsel %vm1315, %v1716, 0
      %v1725 = vsel %vm1315, %v1717, 0
      %v1728 = vsel %vm1315, %v1715, 0
      %1730 = vmatprep.subr.bf16.mxu0 %v1725
      %1731 = vmatpush1.bf16.msra.mxu0 %v1722
      %1732 = vmatprep.subr.bf16.mxu0 0
      %1733 = vmatpush1.bf16.msra.mxu0 0
      %1734 = vmatprep.subr.bf16.mxu0 0
      %1735 = vmatpush1.bf16.msra.mxu0 0
      %1736 = vmatprep.subr.bf16.mxu0 0
      %1737 = vmatpush1.bf16.msra.mxu0 0
      %1738 = vmatprep.subr.bf16.mxu0 0
      %1739 = vmatpush1.bf16.msra.mxu0 0
      %1740 = vmatprep.subr.bf16.mxu0 0
      %1741 = vmatpush1.bf16.msra.mxu0 0
      %1742 = vmatprep.subr.bf16.mxu0 0
      %1743 = vmatpush1.bf16.msra.mxu0 0
      %1744 = vmatprep.subr.bf16.mxu0 0
      %1745 = vmatpush1.bf16.msra.mxu0 0
      %1746 = vmatprep.subr.bf16.mxu0 0
      %1747 = vmatpush1.bf16.msra.mxu0 0
      %1748 = vmatprep.subr.bf16.mxu0 0
      %1749 = vmatpush1.bf16.msra.mxu0 0
      %1750 = vmatprep.subr.bf16.mxu0 0
      %1751 = vmatpush1.bf16.msra.mxu0 0
      %1752 = vmatprep.subr.bf16.mxu0 0
      %1753 = vmatpush1.bf16.msra.mxu0 0
      %1754 = vmatprep.subr.bf16.mxu0 0
      %1755 = vmatpush1.bf16.msra.mxu0 0
      %1756 = vmatprep.subr.bf16.mxu0 0
      %1757 = vmatpush1.bf16.msra.mxu0 0
      %1758 = vmatprep.subr.bf16.mxu0 0
      %1759 = vmatpush1.bf16.msra.mxu0 0
      %1760 = vmatprep.subr.bf16.mxu0 0
      %1761 = vmatpush1.bf16.msra.mxu0 0
      %1762 = vmatprep.mubr.bf16.mxu0 0
      %1763 = vmatmul.mubr.bf16.gmra.mrb[0].mxu0 %v1719
      %v1764 = vpop.f32.mrb[0].mxu0
      %v1765 = vadd.f32 0.0, %v1764
      %v1766 = vpop.f32.mrb[0].mxu0
      %v1767 = vadd.f32 0.0, %v1766
      %v1768 = vpop.f32.mrb[0].mxu0
      %v1769 = vpop.f32.mrb[0].mxu0
      %1770 = vdwg.mxu0
      %1771 = vmatprep.subr.bf16.mxu0 0
      %1772 = vmatpush1.bf16.msra.mxu0 %v1728
      %1773 = vmatprep.subr.bf16.mxu0 0
      %1774 = vmatpush1.bf16.msra.mxu0 0
      %1775 = vmatprep.subr.bf16.mxu0 0
      %1776 = vmatpush1.bf16.msra.mxu0 0
      %1777 = vmatprep.subr.bf16.mxu0 0
      %1778 = vmatpush1.bf16.msra.mxu0 0
      %1779 = vmatprep.subr.bf16.mxu0 0
      %1780 = vmatpush1.bf16.msra.mxu0 0
      %1781 = vmatprep.subr.bf16.mxu0 0
      %1782 = vmatpush1.bf16.msra.mxu0 0
      %1783 = vmatprep.subr.bf16.mxu0 0
      %1784 = vmatpush1.bf16.msra.mxu0 0
      %1785 = vmatprep.subr.bf16.mxu0 0
      %1786 = vmatpush1.bf16.msra.mxu0 0
      %1787 = vmatprep.subr.bf16.mxu0 0
      %1788 = vmatpush1.bf16.msra.mxu0 0
      %1789 = vmatprep.subr.bf16.mxu0 0
      %1790 = vmatpush1.bf16.msra.mxu0 0
      %1791 = vmatprep.subr.bf16.mxu0 0
      %1792 = vmatpush1.bf16.msra.mxu0 0
      %1793 = vmatprep.subr.bf16.mxu0 0
      %1794 = vmatpush1.bf16.msra.mxu0 0
      %1795 = vmatprep.subr.bf16.mxu0 0
      %1796 = vmatpush1.bf16.msra.mxu0 0
      %1797 = vmatprep.subr.bf16.mxu0 0
      %1798 = vmatpush1.bf16.msra.mxu0 0
      %1799 = vmatprep.subr.bf16.mxu0 0
      %1800 = vmatpush1.bf16.msra.mxu0 0
      %1801 = vmatprep.subr.bf16.mxu0 0
      %1802 = vmatpush1.bf16.msra.mxu0 0
      %1803 = vmatprep.mubr.bf16.mxu0 0
      %1804 = vmatmul.mubr.bf16.gmra.mrb[0].mxu0 %v1719
      %v1805 = vpop.f32.mrb[0].mxu0
      %v1806 = vadd.f32 0.0, %v1805
      %v1807 = vpop.f32.mrb[0].mxu0
      %v1808 = vpop.f32.mrb[0].mxu0
      %v1809 = vpop.f32.mrb[0].mxu0
      %1810 = vdwg.mxu0
      %v1811 = vadd.f32 %v1706, %v1765
      %v1812 = vadd.f32 %v1707, %v1767
      %v1813 = vadd.f32 %v1708, %v1806
      %v1814 = vld [vmem:[%s3 + $0x14] sm:$0xf]
      %1815 = vrot.lane.b32.xlu0 %v1300, 108
      %v1816 = vpop.permute.xlu0 %1815
      %1817 = vrot.lane.b32.xlu0 %v1301, 108
      %v1818 = vpop.permute.xlu0 %1817
      %1819 = vrot.lane.b32.xlu0 %v1302, 108
      %v1820 = vpop.permute.xlu0 %1819
      %v1821 = vsel %vm822, %v1816, %v1818
      %v1822 = vsel %vm822, %v1818, %v1820
      %v1824 = vsel %vm1311, %v1814, 0
      %v1827 = vsel %vm1315, %v1821, 0
      %v1830 = vsel %vm1315, %v1822, 0
      %v1833 = vsel %vm1315, %v1820, 0
      %1835 = vmatprep.subr.bf16.mxu0 %v1830
      %1836 = vmatpush1.bf16.msra.mxu0 %v1827
      %1837 = vmatprep.subr.bf16.mxu0 0
      %1838 = vmatpush1.bf16.msra.mxu0 0
      %1839 = vmatprep.subr.bf16.mxu0 0
      %1840 = vmatpush1.bf16.msra.mxu0 0
      %1841 = vmatprep.subr.bf16.mxu0 0
      %1842 = vmatpush1.bf16.msra.mxu0 0
      %1843 = vmatprep.subr.bf16.mxu0 0
      %1844 = vmatpush1.bf16.msra.mxu0 0
      %1845 = vmatprep.subr.bf16.mxu0 0
      %1846 = vmatpush1.bf16.msra.mxu0 0
      %1847 = vmatprep.subr.bf16.mxu0 0
      %1848 = vmatpush1.bf16.msra.mxu0 0
      %1849 = vmatprep.subr.bf16.mxu0 0
      %1850 = vmatpush1.bf16.msra.mxu0 0
      %1851 = vmatprep.subr.bf16.mxu0 0
      %1852 = vmatpush1.bf16.msra.mxu0 0
      %1853 = vmatprep.subr.bf16.mxu0 0
      %1854 = vmatpush1.bf16.msra.mxu0 0
      %1855 = vmatprep.subr.bf16.mxu0 0
      %1856 = vmatpush1.bf16.msra.mxu0 0
      %1857 = vmatprep.subr.bf16.mxu0 0
      %1858 = vmatpush1.bf16.msra.mxu0 0
      %1859 = vmatprep.subr.bf16.mxu0 0
      %1860 = vmatpush1.bf16.msra.mxu0 0
      %1861 = vmatprep.subr.bf16.mxu0 0
      %1862 = vmatpush1.bf16.msra.mxu0 0
      %1863 = vmatprep.subr.bf16.mxu0 0
      %1864 = vmatpush1.bf16.msra.mxu0 0
      %1865 = vmatprep.subr.bf16.mxu0 0
      %1866 = vmatpush1.bf16.msra.mxu0 0
      %1867 = vmatprep.mubr.bf16.mxu0 0
      %1868 = vmatmul.mubr.bf16.gmra.mrb[0].mxu0 %v1824
      %v1869 = vpop.f32.mrb[0].mxu0
      %v1870 = vadd.f32 0.0, %v1869
      %v1871 = vpop.f32.mrb[0].mxu0
      %v1872 = vadd.f32 0.0, %v1871
      %v1873 = vpop.f32.mrb[0].mxu0
      %v1874 = vpop.f32.mrb[0].mxu0
      %1875 = vdwg.mxu0
      %1876 = vmatprep.subr.bf16.mxu0 0
      %1877 = vmatpush1.bf16.msra.mxu0 %v1833
      %1878 = vmatprep.subr.bf16.mxu0 0
      %1879 = vmatpush1.bf16.msra.mxu0 0
      %1880 = vmatprep.subr.bf16.mxu0 0
      %1881 = vmatpush1.bf16.msra.mxu0 0
      %1882 = vmatprep.subr.bf16.mxu0 0
      %1883 = vmatpush1.bf16.msra.mxu0 0
      %1884 = vmatprep.subr.bf16.mxu0 0
      %1885 = vmatpush1.bf16.msra.mxu0 0
      %1886 = vmatprep.subr.bf16.mxu0 0
      %1887 = vmatpush1.bf16.msra.mxu0 0
      %1888 = vmatprep.subr.bf16.mxu0 0
      %1889 = vmatpush1.bf16.msra.mxu0 0
      %1890 = vmatprep.subr.bf16.mxu0 0
      %1891 = vmatpush1.bf16.msra.mxu0 0
      %1892 = vmatprep.subr.bf16.mxu0 0
      %1893 = vmatpush1.bf16.msra.mxu0 0
      %1894 = vmatprep.subr.bf16.mxu0 0
      %1895 = vmatpush1.bf16.msra.mxu0 0
      %1896 = vmatprep.subr.bf16.mxu0 0
      %1897 = vmatpush1.bf16.msra.mxu0 0
      %1898 = vmatprep.subr.bf16.mxu0 0
      %1899 = vmatpush1.bf16.msra.mxu0 0
      %1900 = vmatprep.subr.bf16.mxu0 0
      %1901 = vmatpush1.bf16.msra.mxu0 0
      %1902 = vmatprep.subr.bf16.mxu0 0
      %1903 = vmatpush1.bf16.msra.mxu0 0
      %1904 = vmatprep.subr.bf16.mxu0 0
      %1905 = vmatpush1.bf16.msra.mxu0 0
      %1906 = vmatprep.subr.bf16.mxu0 0
      %1907 = vmatpush1.bf16.msra.mxu0 0
      %1908 = vmatprep.mubr.bf16.mxu0 0
      %1909 = vmatmul.mubr.bf16.gmra.mrb[0].mxu0 %v1824
      %v1910 = vpop.f32.mrb[0].mxu0
      %v1911 = vadd.f32 0.0, %v1910
      %v1912 = vpop.f32.mrb[0].mxu0
      %v1913 = vpop.f32.mrb[0].mxu0
      %v1914 = vpop.f32.mrb[0].mxu0
      %1915 = vdwg.mxu0
      %v1916 = vadd.f32 %v1811, %v1870
      %v1917 = vadd.f32 %v1812, %v1872
      %v1918 = vadd.f32 %v1813, %v1911
      %v1919 = vld [vmem:[%s3 + $0x18] sm:$0xf]
      %1920 = vrot.lane.b32.xlu0 %v1300, 92
      %v1921 = vpop.permute.xlu0 %1920
      %1922 = vrot.lane.b32.xlu0 %v1301, 92
      %v1923 = vpop.permute.xlu0 %1922
      %1924 = vrot.lane.b32.xlu0 %v1302, 92
      %v1925 = vpop.permute.xlu0 %1924
      %v1926 = vsel %vm922, %v1921, %v1923
      %v1927 = vsel %vm922, %v1923, %v1925
      %v1929 = vsel %vm1311, %v1919, 0
      %v1932 = vsel %vm1315, %v1926, 0
      %v1935 = vsel %vm1315, %v1927, 0
      %v1938 = vsel %vm1315, %v1925, 0
      %1940 = vmatprep.subr.bf16.mxu0 %v1935
      %1941 = vmatpush1.bf16.msra.mxu0 %v1932
      %1942 = vmatprep.subr.bf16.mxu0 0
      %1943 = vmatpush1.bf16.msra.mxu0 0
      %1944 = vmatprep.subr.bf16.mxu0 0
      %1945 = vmatpush1.bf16.msra.mxu0 0
      %1946 = vmatprep.subr.bf16.mxu0 0
      %1947 = vmatpush1.bf16.msra.mxu0 0
      %1948 = vmatprep.subr.bf16.mxu0 0
      %1949 = vmatpush1.bf16.msra.mxu0 0
      %1950 = vmatprep.subr.bf16.mxu0 0
      %1951 = vmatpush1.bf16.msra.mxu0 0
      %1952 = vmatprep.subr.bf16.mxu0 0
      %1953 = vmatpush1.bf16.msra.mxu0 0
      %1954 = vmatprep.subr.bf16.mxu0 0
      %1955 = vmatpush1.bf16.msra.mxu0 0
      %1956 = vmatprep.subr.bf16.mxu0 0
      %1957 = vmatpush1.bf16.msra.mxu0 0
      %1958 = vmatprep.subr.bf16.mxu0 0
      %1959 = vmatpush1.bf16.msra.mxu0 0
      %1960 = vmatprep.subr.bf16.mxu0 0
      %1961 = vmatpush1.bf16.msra.mxu0 0
      %1962 = vmatprep.subr.bf16.mxu0 0
      %1963 = vmatpush1.bf16.msra.mxu0 0
      %1964 = vmatprep.subr.bf16.mxu0 0
      %1965 = vmatpush1.bf16.msra.mxu0 0
      %1966 = vmatprep.subr.bf16.mxu0 0
      %1967 = vmatpush1.bf16.msra.mxu0 0
      %1968 = vmatprep.subr.bf16.mxu0 0
      %1969 = vmatpush1.bf16.msra.mxu0 0
      %1970 = vmatprep.subr.bf16.mxu0 0
      %1971 = vmatpush1.bf16.msra.mxu0 0
      %1972 = vmatprep.mubr.bf16.mxu0 0
      %1973 = vmatmul.mubr.bf16.gmra.mrb[0].mxu0 %v1929
      %v1974 = vpop.f32.mrb[0].mxu0
      %v1975 = vadd.f32 0.0, %v1974
      %v1976 = vpop.f32.mrb[0].mxu0
      %v1977 = vadd.f32 0.0, %v1976
      %v1978 = vpop.f32.mrb[0].mxu0
      %v1979 = vpop.f32.mrb[0].mxu0
      %1980 = vdwg.mxu0
      %1981 = vmatprep.subr.bf16.mxu0 0
      %1982 = vmatpush1.bf16.msra.mxu0 %v1938
      %1983 = vmatprep.subr.bf16.mxu0 0
      %1984 = vmatpush1.bf16.msra.mxu0 0
      %1985 = vmatprep.subr.bf16.mxu0 0
      %1986 = vmatpush1.bf16.msra.mxu0 0
      %1987 = vmatprep.subr.bf16.mxu0 0
      %1988 = vmatpush1.bf16.msra.mxu0 0
      %1989 = vmatprep.subr.bf16.mxu0 0
      %1990 = vmatpush1.bf16.msra.mxu0 0
      %1991 = vmatprep.subr.bf16.mxu0 0
      %1992 = vmatpush1.bf16.msra.mxu0 0
      %1993 = vmatprep.subr.bf16.mxu0 0
      %1994 = vmatpush1.bf16.msra.mxu0 0
      %1995 = vmatprep.subr.bf16.mxu0 0
      %1996 = vmatpush1.bf16.msra.mxu0 0
      %1997 = vmatprep.subr.bf16.mxu0 0
      %1998 = vmatpush1.bf16.msra.mxu0 0
      %1999 = vmatprep.subr.bf16.mxu0 0
      %2000 = vmatpush1.bf16.msra.mxu0 0
      %2001 = vmatprep.subr.bf16.mxu0 0
      %2002 = vmatpush1.bf16.msra.mxu0 0
      %2003 = vmatprep.subr.bf16.mxu0 0
      %2004 = vmatpush1.bf16.msra.mxu0 0
      %2005 = vmatprep.subr.bf16.mxu0 0
      %2006 = vmatpush1.bf16.msra.mxu0 0
      %2007 = vmatprep.subr.bf16.mxu0 0
      %2008 = vmatpush1.bf16.msra.mxu0 0
      %2009 = vmatprep.subr.bf16.mxu0 0
      %2010 = vmatpush1.bf16.msra.mxu0 0
      %2011 = vmatprep.subr.bf16.mxu0 0
      %2012 = vmatpush1.bf16.msra.mxu0 0
      %2013 = vmatprep.mubr.bf16.mxu0 0
      %2014 = vmatmul.mubr.bf16.gmra.mrb[0].mxu0 %v1929
      %v2015 = vpop.f32.mrb[0].mxu0
      %v2016 = vadd.f32 0.0, %v2015
      %v2017 = vpop.f32.mrb[0].mxu0
      %v2018 = vpop.f32.mrb[0].mxu0
      %v2019 = vpop.f32.mrb[0].mxu0
      %2020 = vdwg.mxu0
      %v2021 = vadd.f32 %v1916, %v1975
      %v2022 = vadd.f32 %v1917, %v1977
      %v2023 = vadd.f32 %v1918, %v2016
      %v2024 = vld [vmem:[%s3 + $0x1c] sm:$0xf]
      %2025 = vrot.lane.b32.xlu0 %v1300, 91
      %v2026 = vpop.permute.xlu0 %2025
      %2027 = vrot.lane.b32.xlu0 %v1301, 91
      %v2028 = vpop.permute.xlu0 %2027
      %2029 = vrot.lane.b32.xlu0 %v1302, 91
      %v2030 = vpop.permute.xlu0 %2029
      %v2031 = vsel %vm1022, %v2026, %v2028
      %v2032 = vsel %vm1022, %v2028, %v2030
      %v2034 = vsel %vm1311, %v2024, 0
      %v2037 = vsel %vm1315, %v2031, 0
      %v2040 = vsel %vm1315, %v2032, 0
      %v2043 = vsel %vm1315, %v2030, 0
      %2045 = vmatprep.subr.bf16.mxu0 %v2040
      %2046 = vmatpush1.bf16.msra.mxu0 %v2037
      %2047 = vmatprep.subr.bf16.mxu0 0
      %2048 = vmatpush1.bf16.msra.mxu0 0
      %2049 = vmatprep.subr.bf16.mxu0 0
      %2050 = vmatpush1.bf16.msra.mxu0 0
      %2051 = vmatprep.subr.bf16.mxu0 0
      %2052 = vmatpush1.bf16.msra.mxu0 0
      %2053 = vmatprep.subr.bf16.mxu0 0
      %2054 = vmatpush1.bf16.msra.mxu0 0
      %2055 = vmatprep.subr.bf16.mxu0 0
      %2056 = vmatpush1.bf16.msra.mxu0 0
      %2057 = vmatprep.subr.bf16.mxu0 0
      %2058 = vmatpush1.bf16.msra.mxu0 0
      %2059 = vmatprep.subr.bf16.mxu0 0
      %2060 = vmatpush1.bf16.msra.mxu0 0
      %2061 = vmatprep.subr.bf16.mxu0 0
      %2062 = vmatpush1.bf16.msra.mxu0 0
      %2063 = vmatprep.subr.bf16.mxu0 0
      %2064 = vmatpush1.bf16.msra.mxu0 0
      %2065 = vmatprep.subr.bf16.mxu0 0
      %2066 = vmatpush1.bf16.msra.mxu0 0
      %2067 = vmatprep.subr.bf16.mxu0 0
      %2068 = vmatpush1.bf16.msra.mxu0 0
      %2069 = vmatprep.subr.bf16.mxu0 0
      %2070 = vmatpush1.bf16.msra.mxu0 0
      %2071 = vmatprep.subr.bf16.mxu0 0
      %2072 = vmatpush1.bf16.msra.mxu0 0
      %2073 = vmatprep.subr.bf16.mxu0 0
      %2074 = vmatpush1.bf16.msra.mxu0 0
      %2075 = vmatprep.subr.bf16.mxu0 0
      %2076 = vmatpush1.bf16.msra.mxu0 0
      %2077 = vmatprep.mubr.bf16.mxu0 0
      %2078 = vmatmul.mubr.bf16.gmra.mrb[0].mxu0 %v2034
      %v2079 = vpop.f32.mrb[0].mxu0
      %v2080 = vadd.f32 0.0, %v2079
      %v2081 = vpop.f32.mrb[0].mxu0
      %v2082 = vadd.f32 0.0, %v2081
      %v2083 = vpop.f32.mrb[0].mxu0
      %v2084 = vpop.f32.mrb[0].mxu0
      %2085 = vdwg.mxu0
      %2086 = vmatprep.subr.bf16.mxu0 0
      %2087 = vmatpush1.bf16.msra.mxu0 %v2043
      %2088 = vmatprep.subr.bf16.mxu0 0
      %2089 = vmatpush1.bf16.msra.mxu0 0
      %2090 = vmatprep.subr.bf16.mxu0 0
      %2091 = vmatpush1.bf16.msra.mxu0 0
      %2092 = vmatprep.subr.bf16.mxu0 0
      %2093 = vmatpush1.bf16.msra.mxu0 0
      %2094 = vmatprep.subr.bf16.mxu0 0
      %2095 = vmatpush1.bf16.msra.mxu0 0
      %2096 = vmatprep.subr.bf16.mxu0 0
      %2097 = vmatpush1.bf16.msra.mxu0 0
      %2098 = vmatprep.subr.bf16.mxu0 0
      %2099 = vmatpush1.bf16.msra.mxu0 0
      %2100 = vmatprep.subr.bf16.mxu0 0
      %2101 = vmatpush1.bf16.msra.mxu0 0
      %2102 = vmatprep.subr.bf16.mxu0 0
      %2103 = vmatpush1.bf16.msra.mxu0 0
      %2104 = vmatprep.subr.bf16.mxu0 0
      %2105 = vmatpush1.bf16.msra.mxu0 0
      %2106 = vmatprep.subr.bf16.mxu0 0
      %2107 = vmatpush1.bf16.msra.mxu0 0
      %2108 = vmatprep.subr.bf16.mxu0 0
      %2109 = vmatpush1.bf16.msra.mxu0 0
      %2110 = vmatprep.subr.bf16.mxu0 0
      %2111 = vmatpush1.bf16.msra.mxu0 0
      %2112 = vmatprep.subr.bf16.mxu0 0
      %2113 = vmatpush1.bf16.msra.mxu0 0
      %2114 = vmatprep.subr.bf16.mxu0 0
      %2115 = vmatpush1.bf16.msra.mxu0 0
      %2116 = vmatprep.subr.bf16.mxu0 0
      %2117 = vmatpush1.bf16.msra.mxu0 0
      %2118 = vmatprep.mubr.bf16.mxu0 0
      %2119 = vmatmul.mubr.bf16.gmra.mrb[0].mxu0 %v2034
      %v2120 = vpop.f32.mrb[0].mxu0
      %v2121 = vadd.f32 0.0, %v2120
      %v2122 = vpop.f32.mrb[0].mxu0
      %v2123 = vpop.f32.mrb[0].mxu0
      %v2124 = vpop.f32.mrb[0].mxu0
      %2125 = vdwg.mxu0
      %v2126 = vadd.f32 %v2021, %v2080
      %v2127 = vadd.f32 %v2022, %v2082
      %v2128 = vadd.f32 %v2023, %v2121
      %v2129 = vld [vmem:[%s3 + $0x20] sm:$0xf]
      %2130 = vrot.lane.b32.xlu0 %v1300, 90
      %v2131 = vpop.permute.xlu0 %2130
      %2132 = vrot.lane.b32.xlu0 %v1301, 90
      %v2133 = vpop.permute.xlu0 %2132
      %2134 = vrot.lane.b32.xlu0 %v1302, 90
      %v2135 = vpop.permute.xlu0 %2134
      %v2136 = vsel %vm1122, %v2131, %v2133
      %v2137 = vsel %vm1122, %v2133, %v2135
      %v2139 = vsel %vm1311, %v2129, 0
      %v2142 = vsel %vm1315, %v2136, 0
      %v2145 = vsel %vm1315, %v2137, 0
      %v2148 = vsel %vm1315, %v2135, 0
      %2150 = vmatprep.subr.bf16.mxu0 %v2145
      %2151 = vmatpush1.bf16.msra.mxu0 %v2142
      %2152 = vmatprep.subr.bf16.mxu0 0
      %2153 = vmatpush1.bf16.msra.mxu0 0
      %2154 = vmatprep.subr.bf16.mxu0 0
      %2155 = vmatpush1.bf16.msra.mxu0 0
      %2156 = vmatprep.subr.bf16.mxu0 0
      %2157 = vmatpush1.bf16.msra.mxu0 0
      %2158 = vmatprep.subr.bf16.mxu0 0
      %2159 = vmatpush1.bf16.msra.mxu0 0
      %2160 = vmatprep.subr.bf16.mxu0 0
      %2161 = vmatpush1.bf16.msra.mxu0 0
      %2162 = vmatprep.subr.bf16.mxu0 0
      %2163 = vmatpush1.bf16.msra.mxu0 0
      %2164 = vmatprep.subr.bf16.mxu0 0
      %2165 = vmatpush1.bf16.msra.mxu0 0
      %2166 = vmatprep.subr.bf16.mxu0 0
      %2167 = vmatpush1.bf16.msra.mxu0 0
      %2168 = vmatprep.subr.bf16.mxu0 0
      %2169 = vmatpush1.bf16.msra.mxu0 0
      %2170 = vmatprep.subr.bf16.mxu0 0
      %2171 = vmatpush1.bf16.msra.mxu0 0
      %2172 = vmatprep.subr.bf16.mxu0 0
      %2173 = vmatpush1.bf16.msra.mxu0 0
      %2174 = vmatprep.subr.bf16.mxu0 0
      %2175 = vmatpush1.bf16.msra.mxu0 0
      %2176 = vmatprep.subr.bf16.mxu0 0
      %2177 = vmatpush1.bf16.msra.mxu0 0
      %2178 = vmatprep.subr.bf16.mxu0 0
      %2179 = vmatpush1.bf16.msra.mxu0 0
      %2180 = vmatprep.subr.bf16.mxu0 0
      %2181 = vmatpush1.bf16.msra.mxu0 0
      %2182 = vmatprep.mubr.bf16.mxu0 0
      %2183 = vmatmul.mubr.bf16.gmra.mrb[0].mxu0 %v2139
      %v2184 = vpop.f32.mrb[0].mxu0
      %v2185 = vadd.f32 0.0, %v2184
      %v2186 = vpop.f32.mrb[0].mxu0
      %v2187 = vadd.f32 0.0, %v2186
      %v2188 = vpop.f32.mrb[0].mxu0
      %v2189 = vpop.f32.mrb[0].mxu0
      %2190 = vdwg.mxu0
      %2191 = vmatprep.subr.bf16.mxu0 0
      %2192 = vmatpush1.bf16.msra.mxu0 %v2148
      %2193 = vmatprep.subr.bf16.mxu0 0
      %2194 = vmatpush1.bf16.msra.mxu0 0
      %2195 = vmatprep.subr.bf16.mxu0 0
      %2196 = vmatpush1.bf16.msra.mxu0 0
      %2197 = vmatprep.subr.bf16.mxu0 0
      %2198 = vmatpush1.bf16.msra.mxu0 0
      %2199 = vmatprep.subr.bf16.mxu0 0
      %2200 = vmatpush1.bf16.msra.mxu0 0
      %2201 = vmatprep.subr.bf16.mxu0 0
      %2202 = vmatpush1.bf16.msra.mxu0 0
      %2203 = vmatprep.subr.bf16.mxu0 0
      %2204 = vmatpush1.bf16.msra.mxu0 0
      %2205 = vmatprep.subr.bf16.mxu0 0
      %2206 = vmatpush1.bf16.msra.mxu0 0
      %2207 = vmatprep.subr.bf16.mxu0 0
      %2208 = vmatpush1.bf16.msra.mxu0 0
      %2209 = vmatprep.subr.bf16.mxu0 0
      %2210 = vmatpush1.bf16.msra.mxu0 0
      %2211 = vmatprep.subr.bf16.mxu0 0
      %2212 = vmatpush1.bf16.msra.mxu0 0
      %2213 = vmatprep.subr.bf16.mxu0 0
      %2214 = vmatpush1.bf16.msra.mxu0 0
      %2215 = vmatprep.subr.bf16.mxu0 0
      %2216 = vmatpush1.bf16.msra.mxu0 0
      %2217 = vmatprep.subr.bf16.mxu0 0
      %2218 = vmatpush1.bf16.msra.mxu0 0
      %2219 = vmatprep.subr.bf16.mxu0 0
      %2220 = vmatpush1.bf16.msra.mxu0 0
      %2221 = vmatprep.subr.bf16.mxu0 0
      %2222 = vmatpush1.bf16.msra.mxu0 0
      %2223 = vmatprep.mubr.bf16.mxu0 0
      %2224 = vmatmul.mubr.bf16.gmra.mrb[0].mxu0 %v2139
      %v2225 = vpop.f32.mrb[0].mxu0
      %v2226 = vadd.f32 0.0, %v2225
      %v2227 = vpop.f32.mrb[0].mxu0
      %v2228 = vpop.f32.mrb[0].mxu0
      %v2229 = vpop.f32.mrb[0].mxu0
      %2230 = vdwg.mxu0
      %v2231 = vadd.f32 %v2126, %v2185
      %v2232 = vadd.f32 %v2127, %v2187
      %v2233 = vadd.f32 %v2128, %v2226
      %v2234 = vld [vmem:[%s4] sm:$0xff]
      %2236 = vset.pattern.permute.xlu0 0
      %2237 = vperm.xlu0 %2236, %v2234
      %v2238 = vpop.permute.xlu0 %2237
      %v2240 = vadd.f32 %v2231, %v2238
      %v2241 = vadd.f32 %v2232, %v2238
      %v2242 = vadd.f32 %v2233, %v2238
      %v2243 = vxor.u32 %v2240, 2147483648
      %v2244 = vxor.u32 %v2241, 2147483648
      %v2245 = vxor.u32 %v2242, 2147483648
      %v2246 = vmul.f32 %v2243, 1.442695
      %v2247 = vpow.pop %v2246
      %v2248 = vmul.f32 %v2244, 1.442695
      %v2249 = vpow.pop %v2248
      %v2250 = vmul.f32 %v2245, 1.442695
      %v2251 = vpow.pop %v2250
      %v2252 = vadd.f32 %v2247, 1.0
      %v2253 = vadd.f32 %v2249, 1.0
      %v2254 = vadd.f32 %v2251, 1.0
      %v2255 = vrcp.pop %v2252
      %v2256 = vmul.f32 1.0, %v2255
      %v2257 = vrcp.pop %v2253
      %v2258 = vmul.f32 1.0, %v2257
      %v2259 = vrcp.pop %v2254
      %v2260 = vmul.f32 1.0, %v2259
      %v2261 = vmul.f32 %v2240, %v2256
      %v2262 = vmul.f32 %v2241, %v2258
      %v2263 = vmul.f32 %v2242, %v2260
      %v2264 = vld [vmem:[%s5] sm:$0xf]
      %v2265 = vpack.c.bf16 %v2261, %v2261
      %v2266 = vpack.c.bf16 %v2262, %v2262
      %v2267 = vpack.c.bf16 %v2263, %v2263
      %v2268 = vld [vmem:[%s6] sm:$0xff]
      %2270 = vset.pattern.permute.xlu0 0
      %2271 = vperm.xlu0 %2270, %v2268
      %v2272 = vpop.permute.xlu0 %2271
      %v2275 = vsel %vm1311, %v2264, 0
      %v2278 = vsel %vm1315, %v2265, 0
      %v2281 = vsel %vm1315, %v2266, 0
      %v2284 = vsel %vm1315, %v2267, 0
      %2286 = vmatprep.subr.bf16.mxu0 %v2281
      %2287 = vmatpush1.bf16.msra.mxu0 %v2278
      %2288 = vmatprep.subr.bf16.mxu0 0
      %2289 = vmatpush1.bf16.msra.mxu0 0
      %2290 = vmatprep.subr.bf16.mxu0 0
      %2291 = vmatpush1.bf16.msra.mxu0 0
      %2292 = vmatprep.subr.bf16.mxu0 0
      %2293 = vmatpush1.bf16.msra.mxu0 0
      %2294 = vmatprep.subr.bf16.mxu0 0
      %2295 = vmatpush1.bf16.msra.mxu0 0
      %2296 = vmatprep.subr.bf16.mxu0 0
      %2297 = vmatpush1.bf16.msra.mxu0 0
      %2298 = vmatprep.subr.bf16.mxu0 0
      %2299 = vmatpush1.bf16.msra.mxu0 0
      %2300 = vmatprep.subr.bf16.mxu0 0
      %2301 = vmatpush1.bf16.msra.mxu0 0
      %2302 = vmatprep.subr.bf16.mxu0 0
      %2303 = vmatpush1.bf16.msra.mxu0 0
      %2304 = vmatprep.subr.bf16.mxu0 0
      %2305 = vmatpush1.bf16.msra.mxu0 0
      %2306 = vmatprep.subr.bf16.mxu0 0
      %2307 = vmatpush1.bf16.msra.mxu0 0
      %2308 = vmatprep.subr.bf16.mxu0 0
      %2309 = vmatpush1.bf16.msra.mxu0 0
      %2310 = vmatprep.subr.bf16.mxu0 0
      %2311 = vmatpush1.bf16.msra.mxu0 0
      %2312 = vmatprep.subr.bf16.mxu0 0
      %2313 = vmatpush1.bf16.msra.mxu0 0
      %2314 = vmatprep.subr.bf16.mxu0 0
      %2315 = vmatpush1.bf16.msra.mxu0 0
      %2316 = vmatprep.subr.bf16.mxu0 0
      %2317 = vmatpush1.bf16.msra.mxu0 0
      %2318 = vmatprep.mubr.bf16.mxu0 0
      %2319 = vmatmul.mubr.bf16.gmra.mrb[0].mxu0 %v2275
      %v2320 = vpop.f32.mrb[0].mxu0
      %v2321 = vadd.f32 %v2272, %v2320
      %v2322 = vpop.f32.mrb[0].mxu0
      %v2323 = vadd.f32 %v2272, %v2322
      %v2324 = vpop.f32.mrb[0].mxu0
      %v2325 = vpop.f32.mrb[0].mxu0
      %2326 = vdwg.mxu0
      %2327 = vmatprep.subr.bf16.mxu0 0
      %2328 = vmatpush1.bf16.msra.mxu0 %v2284
      %2329 = vmatprep.subr.bf16.mxu0 0
      %2330 = vmatpush1.bf16.msra.mxu0 0
      %2331 = vmatprep.subr.bf16.mxu0 0
      %2332 = vmatpush1.bf16.msra.mxu0 0
      %2333 = vmatprep.subr.bf16.mxu0 0
      %2334 = vmatpush1.bf16.msra.mxu0 0
      %2335 = vmatprep.subr.bf16.mxu0 0
      %2336 = vmatpush1.bf16.msra.mxu0 0
      %2337 = vmatprep.subr.bf16.mxu0 0
      %2338 = vmatpush1.bf16.msra.mxu0 0
      %2339 = vmatprep.subr.bf16.mxu0 0
      %2340 = vmatpush1.bf16.msra.mxu0 0
      %2341 = vmatprep.subr.bf16.mxu0 0
      %2342 = vmatpush1.bf16.msra.mxu0 0
      %2343 = vmatprep.subr.bf16.mxu0 0
      %2344 = vmatpush1.bf16.msra.mxu0 0
      %2345 = vmatprep.subr.bf16.mxu0 0
      %2346 = vmatpush1.bf16.msra.mxu0 0
      %2347 = vmatprep.subr.bf16.mxu0 0
      %2348 = vmatpush1.bf16.msra.mxu0 0
      %2349 = vmatprep.subr.bf16.mxu0 0
      %2350 = vmatpush1.bf16.msra.mxu0 0
      %2351 = vmatprep.subr.bf16.mxu0 0
      %2352 = vmatpush1.bf16.msra.mxu0 0
      %2353 = vmatprep.subr.bf16.mxu0 0
      %2354 = vmatpush1.bf16.msra.mxu0 0
      %2355 = vmatprep.subr.bf16.mxu0 0
      %2356 = vmatpush1.bf16.msra.mxu0 0
      %2357 = vmatprep.subr.bf16.mxu0 0
      %2358 = vmatpush1.bf16.msra.mxu0 0
      %2359 = vmatprep.mubr.bf16.mxu0 0
      %2360 = vmatmul.mubr.bf16.gmra.mrb[0].mxu0 %v2275
      %v2361 = vpop.f32.mrb[0].mxu0
      %v2362 = vadd.f32 %v2272, %v2361
      %v2363 = vpop.f32.mrb[0].mxu0
      %v2364 = vpop.f32.mrb[0].mxu0
      %v2365 = vpop.f32.mrb[0].mxu0
      %2366 = vdwg.mxu0
      %2367 = vst [vmem:[%s305] sm:$0xff] %v2321
      %2368 = vst [vmem:[%s305 + $0x8] sm:$0xff] %v2323
      %vm2369 = vcmask 261120
      %2370 = vst.msk [vmem:[%s305 + $0x10] sm:$0xff] %vm2369, %v2362
      %p2371 = scmp.lt.s32.totalorder %s19, 1
      %s2372 = scalar_select %p2371, %s19, 1
      %s2373 = smul.addr %s2372, 3
      %s2374 = smul.addr %s2373, 8
      %s2375 = scalar_lea.vmem %s8, %s2374
      // Predicated region
      $region53: #{detection_head_forward.1} parent=51 // pred_check
        %p2376 = pneg %p210
      $region54: #{detection_head_forward.1} parent=51 // pred_check_branch
        %2378 = sbr.rel (%p2376) target = $region56
      $region55: #{detection_head_forward.1} parent=51 // pred_region
        _
      $region56: #{detection_head_forward.1} parent=51 // pred_fallthru
        _
    $region52: #{detection_head_forward.1} parent=5 // pred_fallthru
      _
    %p2379 = scmp.le.s32.totalorder 2, %s14
    // Predicated region
    $region57: #{detection_head_forward.1} parent=5 // pred_check
      %p2380 = pneg %p2379
    $region58: #{detection_head_forward.1} parent=5 // pred_check_branch
      %2382 = sbr.rel (%p2380) target = $region60
    $region59: #{detection_head_forward.1} parent=5 // pred_region
      %s2383 = ssub.s32 %s14, 2
      // Predicated region
      $region61: #{detection_head_forward.1} parent=59 // pred_check
        %p2384 = pneg %p216
      $region62: #{detection_head_forward.1} parent=59 // pred_check_branch
        %2386 = sbr.rel (%p2384) target = $region64
      $region63: #{detection_head_forward.1} parent=59 // pred_region
        %p2387 = scmp.lt.s32.totalorder %s20, 1
        %s2388 = scalar_select %p2387, %s20, 1
        %s2389 = smul.addr %s2388, 3
        %s2390 = smul.addr %s2389, 8
        %s2391 = scalar_lea.vmem %s8, %s2390
      $region64: #{detection_head_forward.1} parent=59 // pred_fallthru
        _
    $region60: #{detection_head_forward.1} parent=5 // pred_fallthru
      _
  $region6: #{detection_head_forward.1} parent=0 // loop_footer
    %s18 = sadd.s32 1, %s14
  $region7: #{detection_head_forward.1} parent=0 // loop_footer_branch
    %13 = sbr.rel target = $region3
  $region8: #{detection_head_forward.1} parent=0 // loop_exit
    _

</llo_original>
